<compile_context>
chip_gen: v7x
topology: tpu7x:2x2x1
jax: 0.10.0
libtpu: 0.0.40
codegen_flags: <defaults>
</compile_context>

<pallas_src>
import functools

import jax
import jax.numpy as jnp
import numpy as np
from jax.experimental import pallas as pl
from jax.experimental.pallas import tpu as pltpu


def _fused_cnn_kernel(p0_ref, *refs, hs, W, cout):
    """One batch element: 4 fused ConvBlocks, all intermediates kept in registers."""
    nb = len(hs)
    w_refs = refs[:nb]            # block 0: (9*C0, cout); blocks>=1: (3, 3*Cin, cout), bf16
    shift_ref = refs[nb]          # (nb, cout) f32 — conv bias + BN folded
    alpha_ref = refs[nb + 1]      # (nb,) f32 in SMEM — PReLU slope
    out_ref = refs[nb + 2]        # (1, h_out, W, cout)

    def epilogue(acc, i, H):
        # acc: (H*W, cout) f32.  Shift + PReLU + MaxPool2d([2,1]) (rows h, h+1 are W apart).
        z = acc + shift_ref[i:i + 1, :]
        alpha = alpha_ref[i]
        z = jnp.where(z >= 0.0, z, alpha * z)
        zg = z.reshape(H // 2, 2 * W, cout)
        return jnp.maximum(zg[:, :W, :], zg[:, W:, :])        # (H//2, W, cout) f32

    # ---- block 0: plain matmul on wrapper-side im2col (4-lane relayout left to XLA) ----
    acc0 = jnp.dot(p0_ref[0], w_refs[0][...], preferred_element_type=jnp.float32)
    y = epilogue(acc0, 0, hs[0])

    # ---- blocks 1..nb-1: per-kh accumulation (K = 3*Cin), shifts done in registers ----
    for i in range(1, nb):
        H = hs[i]
        Cin = y.shape[-1]
        yb = y.astype(jnp.bfloat16)                                    # (H, W, Cin)
        zero_row = jnp.zeros((1, W, Cin), jnp.bfloat16)
        zero_col = jnp.zeros((H, 1, Cin), jnp.bfloat16)
        acc = None
        for kh in range(3):
            dh = kh - 1
            if dh == -1:                                               # x_h[h] = x[h-1]
                x_h = jnp.concatenate([zero_row, yb[:H - 1]], axis=0)
            elif dh == 1:                                              # x_h[h] = x[h+1]
                x_h = jnp.concatenate([yb[1:], zero_row], axis=0)
            else:
                x_h = yb
            xw = jnp.concatenate([zero_col, x_h, zero_col], axis=1)    # (H, W+2, Cin)
            patch = jnp.concatenate([xw[:, kw:kw + W, :] for kw in range(3)],
                                    axis=-1).reshape(H * W, 3 * Cin)   # bf16
            d = jnp.dot(patch, w_refs[i][kh], preferred_element_type=jnp.float32)
            acc = d if acc is None else acc + d
        y = epilogue(acc, i, H)

    out_ref[0] = y.astype(out_ref.dtype)


def _replicated_spec(shape):
    zeros = (0,) * len(shape)
    return pl.BlockSpec(shape, lambda n: zeros)


def cnn_embedder(x_nchw, all_params, eps=1e-5):
    """PyTorch-facing wrapper: NCHW in, NCHW out (matches CNNEmbedder.forward)."""
    x = jnp.transpose(x_nchw, (0, 2, 3, 1)).astype(jnp.float32)   # NCHW -> NHWC
    N, H0, W, C0 = x.shape
    nb = len(all_params)
    assert H0 % (2 ** nb) == 0, "MaxPool(2,1) chain assumes H divisible by 2**num_blocks"

    hs, ws, shifts, alphas = [], [], [], []
    h, c = H0, C0
    for i, (w, b, gamma, beta, mean, var, alpha) in enumerate(all_params):
        kh, kw, cin, cout = w.shape
        assert (kh, kw) == (3, 3) and cin == c
        hs.append(h)
        scale = gamma / jnp.sqrt(var + eps)              # BN scale, folded into the weights
        shifts.append(beta + scale * (b - mean))         # conv bias + BN shift (kept in kernel)
        wf = w * scale                                   # exact fold, per output channel
        if i == 0:
            ws.append(wf.reshape(9 * cin, cout).astype(jnp.bfloat16))     # (kh,kw,ci)-major rows
        else:
            ws.append(wf.reshape(3, 3 * cin, cout).astype(jnp.bfloat16))  # per-kh, (kw,ci)-major
        alphas.append(jnp.asarray(alpha, jnp.float32).reshape(()))
        h, c = h // 2, cout
    cout, h_out = c, h

    # Pre-im2col block 0 in the wrapper (XLA); Cin=4 relayout work stays out of the kernel.
    xp = jnp.pad(x, ((0, 0), (1, 1), (1, 1), (0, 0)))
    cols = [xp[:, kh:kh + H0, kw:kw + W, :] for kh in range(3) for kw in range(3)]
    patches0 = jnp.concatenate(cols, axis=-1).reshape(N, H0 * W, 9 * C0).astype(jnp.bfloat16)

    kernel = functools.partial(_fused_cnn_kernel, hs=tuple(hs), W=W, cout=cout)

    grid_spec = pltpu.PrefetchScalarGridSpec(
        num_scalar_prefetch=0,
        grid=(N,),
        in_specs=(
            [pl.BlockSpec((1, H0 * W, 9 * C0), lambda n: (n, 0, 0))]      # block-0 patches
            + [_replicated_spec(w.shape) for w in ws]                      # folded bf16 weights
            + [pl.BlockSpec((nb, cout), lambda n: (0, 0)),                 # shifts (VMEM)
               pl.BlockSpec(memory_space=pltpu.MemorySpace.SMEM)]          # PReLU alphas (SMEM)
        ),
        out_specs=pl.BlockSpec((1, h_out, W, cout), lambda n: (n, 0, 0, 0)),
    )

    out = pl.pallas_call(
        kernel,
        out_shape=jax.ShapeDtypeStruct((N, h_out, W, cout), jnp.float32),
        grid_spec=grid_spec,
        compiler_params=pltpu.CompilerParams(dimension_semantics=("parallel",)),
    )(patches0, *ws, jnp.stack(shifts), jnp.stack(alphas))
    return jnp.transpose(out, (0, 3, 1, 2))                   # NHWC -> NCHW


# ------------------------- pure-JAX reference (for checking) -------------------------
def conv_block_ref(x_nhwc, params, eps=1e-5):
    w, b, gamma, beta, mean, var, alpha = params
    y = jax.lax.conv_general_dilated(
        x_nhwc, w, window_strides=(1, 1), padding=((1, 1), (1, 1)),
        dimension_numbers=("NHWC", "HWIO", "NHWC"),
        precision=jax.lax.Precision.HIGHEST) + b
    y = gamma * (y - mean) / jnp.sqrt(var + eps) + beta
    y = jnp.where(y >= 0, y, alpha * y)
    y = jax.lax.reduce_window(y, -jnp.inf, jax.lax.max,
                              (1, 2, 1, 1), (1, 2, 1, 1), "VALID")
    return y


def cnn_embedder_ref(x_nchw, all_params):
    x = jnp.transpose(x_nchw, (0, 2, 3, 1))
    for params in all_params:
        x = conv_block_ref(x, params)
    return jnp.transpose(x, (0, 3, 1, 2))


# ------------------------------- parameter construction -------------------------------
def make_block_params(key, ch_in, ch_out):
    ks = jax.random.split(key, 6)
    w = 0.1 * jax.random.normal(ks[0], (3, 3, ch_in, ch_out), jnp.float32)
    b = 0.1 * jax.random.normal(ks[1], (ch_out,), jnp.float32)
    gamma = 1.0 + 0.1 * jax.random.normal(ks[2], (ch_out,), jnp.float32)
    beta = 0.1 * jax.random.normal(ks[3], (ch_out,), jnp.float32)
    mean = 0.1 * jax.random.normal(ks[4], (ch_out,), jnp.float32)
    var = jnp.abs(jax.random.normal(ks[5], (ch_out,), jnp.float32)) + 0.5
    alpha = jnp.float32(0.25)                        # nn.PReLU() default init
    return (w, b, gamma, beta, mean, var, alpha)


if __name__ == "__main__":
    N, CH_IN, CH_OUT, H, W = 2, 4, 32, 16, 16

    key = jax.random.PRNGKey(0)
    kx, k1, k2, k3, k4 = jax.random.split(key, 5)
    x = jax.random.normal(kx, (N, CH_IN, H, W), jnp.float32)   # NCHW, like PyTorch

    all_params = [
        make_block_params(k1, CH_IN, CH_OUT),
        make_block_params(k2, CH_OUT, CH_OUT),
        make_block_params(k3, CH_OUT, CH_OUT),
        make_block_params(k4, CH_OUT, CH_OUT),
    ]

    out = jax.block_until_ready(jax.jit(cnn_embedder)(x, all_params))
    assert out.shape == (N, CH_OUT, H // 16, W), out.shape     # (2, 32, 1, 16)

    ref = jax.block_until_ready(cnn_embedder_ref(x, all_params))
    # Kernel uses bf16 MXU inputs with f32 accumulation (per perf feedback); the
    # reference is f32 with HIGHEST precision, so allow a slightly larger atol.
    np.testing.assert_allclose(np.asarray(out), np.asarray(ref),
                               rtol=2e-2, atol=3e-2)

    print("KERNEL_OK")
</pallas_src>

<mosaic_0001>
module attributes {stable_mosaic.version = 11 : i64} {
  func.func @_fused_cnn_kernel(%arg0: i32, %arg1: memref<1x256x36xbf16, #tpu.memory_space<vmem>>, %arg2: memref<36x32xbf16, #tpu.memory_space<vmem>>, %arg3: memref<3x96x32xbf16, #tpu.memory_space<vmem>>, %arg4: memref<3x96x32xbf16, #tpu.memory_space<vmem>>, %arg5: memref<3x96x32xbf16, #tpu.memory_space<vmem>>, %arg6: memref<4x32xf32, #tpu.memory_space<vmem>>, %arg7: memref<4xf32, #tpu.memory_space<smem>>, %arg8: memref<1x1x16x32xf32, #tpu.memory_space<vmem>>) attributes {dimension_semantics = [#tpu.dimension_semantics<parallel>], iteration_bounds = array<i64: 2>, scalar_prefetch = 0 : i64, scratch_operands = 0 : i64, tpu.core_type = #tpu.core_type<tc>, window_params = [{transform_indices = @transform_0, window_bounds = array<i64: 1, 256, 36>}, {pipeline_mode = #tpu.pipeline_mode<synchronous>, transform_indices = @transform_1, window_bounds = array<i64: 36, 32>}, {pipeline_mode = #tpu.pipeline_mode<synchronous>, transform_indices = @transform_2, window_bounds = array<i64: 3, 96, 32>}, {pipeline_mode = #tpu.pipeline_mode<synchronous>, transform_indices = @transform_3, window_bounds = array<i64: 3, 96, 32>}, {pipeline_mode = #tpu.pipeline_mode<synchronous>, transform_indices = @transform_4, window_bounds = array<i64: 3, 96, 32>}, {pipeline_mode = #tpu.pipeline_mode<synchronous>, transform_indices = @transform_5, window_bounds = array<i64: 4, 32>}, {transform_indices = @transform_6, window_bounds = array<i64: 4>}, {transform_indices = @transform_7, window_bounds = array<i64: 1, 1, 16, 32>}]} {
    %c0 = arith.constant 0 : index
    %c0_0 = arith.constant 0 : index
    %c0_1 = arith.constant 0 : index
    %0 = vector.load %arg1[%c0, %c0_0, %c0_1] : memref<1x256x36xbf16, #tpu.memory_space<vmem>>, vector<1x256x36xbf16>
    %1 = vector.shape_cast %0 : vector<1x256x36xbf16> to vector<256x36xbf16>
    %c0_2 = arith.constant 0 : index
    %c0_3 = arith.constant 0 : index
    %2 = vector.load %arg2[%c0_2, %c0_3] : memref<36x32xbf16, #tpu.memory_space<vmem>>, vector<36x32xbf16>
    %cst = arith.constant dense<0.000000e+00> : vector<256x32xf32>
    %3 = tpu.matmul %1, %2, %cst {dimension_numbers = #tpu.dot_dimension_numbers<[1], [0], [0], [1], [0, 0, 1, 1], [], []>} : vector<256x36xbf16>, vector<36x32xbf16>, vector<256x32xf32> -> vector<256x32xf32>
    %c0_4 = arith.constant 0 : index
    %c0_5 = arith.constant 0 : index
    %4 = vector.load %arg6[%c0_4, %c0_5] : memref<4x32xf32, #tpu.memory_space<vmem>>, vector<1x32xf32>
    %5 = vector.broadcast %4 : vector<1x32xf32> to vector<256x32xf32>
    %6 = arith.addf %3, %5 : vector<256x32xf32>
    %c0_6 = arith.constant 0 : index
    %7 = memref.load %arg7[%c0_6] : memref<4xf32, #tpu.memory_space<smem>>
    %cst_7 = arith.constant 0.000000e+00 : f32
    %8 = vector.broadcast %cst_7 : f32 to vector<256x32xf32>
    %9 = arith.cmpf oge, %6, %8 : vector<256x32xf32>
    %10 = vector.broadcast %7 : f32 to vector<256x32xf32>
    %11 = arith.mulf %10, %6 : vector<256x32xf32>
    %12 = arith.select %9, %6, %11 : vector<256x32xi1>, vector<256x32xf32>
    %13 = vector.shape_cast %12 : vector<256x32xf32> to vector<8x32x32xf32>
    %14 = vector.extract_strided_slice %13 {offsets = [0, 0, 0], sizes = [8, 16, 32], strides = [1, 1, 1]} : vector<8x32x32xf32> to vector<8x16x32xf32>
    %15 = vector.extract_strided_slice %13 {offsets = [0, 16, 0], sizes = [8, 16, 32], strides = [1, 1, 1]} : vector<8x32x32xf32> to vector<8x16x32xf32>
    %16 = arith.maximumf %14, %15 : vector<8x16x32xf32>
    %17 = arith.truncf %16 : vector<8x16x32xf32> to vector<8x16x32xbf16>
    %cst_8 = arith.constant 0.000000e+00 : bf16
    %18 = vector.broadcast %cst_8 : bf16 to vector<1x16x32xbf16>
    %cst_9 = arith.constant 0.000000e+00 : bf16
    %19 = vector.broadcast %cst_9 : bf16 to vector<8x1x32xbf16>
    %20 = vector.extract_strided_slice %17 {offsets = [0, 0, 0], sizes = [7, 16, 32], strides = [1, 1, 1]} : vector<8x16x32xbf16> to vector<7x16x32xbf16>
    %21 = tpu.concatenate %18, %20 in 0 : vector<1x16x32xbf16>, vector<7x16x32xbf16> -> vector<8x16x32xbf16>
    %22 = tpu.concatenate %19, %21, %19 in 1 : vector<8x1x32xbf16>, vector<8x16x32xbf16>, vector<8x1x32xbf16> -> vector<8x18x32xbf16>
    %23 = vector.extract_strided_slice %22 {offsets = [0, 0, 0], sizes = [8, 16, 32], strides = [1, 1, 1]} : vector<8x18x32xbf16> to vector<8x16x32xbf16>
    %24 = vector.extract_strided_slice %22 {offsets = [0, 1, 0], sizes = [8, 16, 32], strides = [1, 1, 1]} : vector<8x18x32xbf16> to vector<8x16x32xbf16>
    %25 = vector.extract_strided_slice %22 {offsets = [0, 2, 0], sizes = [8, 16, 32], strides = [1, 1, 1]} : vector<8x18x32xbf16> to vector<8x16x32xbf16>
    %26 = tpu.concatenate %23, %24, %25 in 2 : vector<8x16x32xbf16>, vector<8x16x32xbf16>, vector<8x16x32xbf16> -> vector<8x16x96xbf16>
    %27 = vector.shape_cast %26 : vector<8x16x96xbf16> to vector<128x96xbf16>
    %c0_10 = arith.constant 0 : index
    %c0_11 = arith.constant 0 : index
    %c0_12 = arith.constant 0 : index
    %28 = vector.load %arg3[%c0_10, %c0_11, %c0_12] : memref<3x96x32xbf16, #tpu.memory_space<vmem>>, vector<1x96x32xbf16>
    %29 = vector.shape_cast %28 : vector<1x96x32xbf16> to vector<96x32xbf16>
    %cst_13 = arith.constant dense<0.000000e+00> : vector<128x32xf32>
    %30 = tpu.matmul %27, %29, %cst_13 {dimension_numbers = #tpu.dot_dimension_numbers<[1], [0], [0], [1], [0, 0, 1, 1], [], []>} : vector<128x96xbf16>, vector<96x32xbf16>, vector<128x32xf32> -> vector<128x32xf32>
    %31 = tpu.concatenate %19, %17, %19 in 1 : vector<8x1x32xbf16>, vector<8x16x32xbf16>, vector<8x1x32xbf16> -> vector<8x18x32xbf16>
    %32 = vector.extract_strided_slice %31 {offsets = [0, 0, 0], sizes = [8, 16, 32], strides = [1, 1, 1]} : vector<8x18x32xbf16> to vector<8x16x32xbf16>
    %33 = vector.extract_strided_slice %31 {offsets = [0, 1, 0], sizes = [8, 16, 32], strides = [1, 1, 1]} : vector<8x18x32xbf16> to vector<8x16x32xbf16>
    %34 = vector.extract_strided_slice %31 {offsets = [0, 2, 0], sizes = [8, 16, 32], strides = [1, 1, 1]} : vector<8x18x32xbf16> to vector<8x16x32xbf16>
    %35 = tpu.concatenate %32, %33, %34 in 2 : vector<8x16x32xbf16>, vector<8x16x32xbf16>, vector<8x16x32xbf16> -> vector<8x16x96xbf16>
    %36 = vector.shape_cast %35 : vector<8x16x96xbf16> to vector<128x96xbf16>
    %c1 = arith.constant 1 : index
    %c0_14 = arith.constant 0 : index
    %c0_15 = arith.constant 0 : index
    %37 = vector.load %arg3[%c1, %c0_14, %c0_15] : memref<3x96x32xbf16, #tpu.memory_space<vmem>>, vector<1x96x32xbf16>
    %38 = vector.shape_cast %37 : vector<1x96x32xbf16> to vector<96x32xbf16>
    %cst_16 = arith.constant dense<0.000000e+00> : vector<128x32xf32>
    %39 = tpu.matmul %36, %38, %cst_16 {dimension_numbers = #tpu.dot_dimension_numbers<[1], [0], [0], [1], [0, 0, 1, 1], [], []>} : vector<128x96xbf16>, vector<96x32xbf16>, vector<128x32xf32> -> vector<128x32xf32>
    %40 = arith.addf %30, %39 : vector<128x32xf32>
    %41 = vector.extract_strided_slice %17 {offsets = [1, 0, 0], sizes = [7, 16, 32], strides = [1, 1, 1]} : vector<8x16x32xbf16> to vector<7x16x32xbf16>
    %42 = tpu.concatenate %41, %18 in 0 : vector<7x16x32xbf16>, vector<1x16x32xbf16> -> vector<8x16x32xbf16>
    %43 = tpu.concatenate %19, %42, %19 in 1 : vector<8x1x32xbf16>, vector<8x16x32xbf16>, vector<8x1x32xbf16> -> vector<8x18x32xbf16>
    %44 = vector.extract_strided_slice %43 {offsets = [0, 0, 0], sizes = [8, 16, 32], strides = [1, 1, 1]} : vector<8x18x32xbf16> to vector<8x16x32xbf16>
    %45 = vector.extract_strided_slice %43 {offsets = [0, 1, 0], sizes = [8, 16, 32], strides = [1, 1, 1]} : vector<8x18x32xbf16> to vector<8x16x32xbf16>
    %46 = vector.extract_strided_slice %43 {offsets = [0, 2, 0], sizes = [8, 16, 32], strides = [1, 1, 1]} : vector<8x18x32xbf16> to vector<8x16x32xbf16>
    %47 = tpu.concatenate %44, %45, %46 in 2 : vector<8x16x32xbf16>, vector<8x16x32xbf16>, vector<8x16x32xbf16> -> vector<8x16x96xbf16>
    %48 = vector.shape_cast %47 : vector<8x16x96xbf16> to vector<128x96xbf16>
    %c2 = arith.constant 2 : index
    %c0_17 = arith.constant 0 : index
    %c0_18 = arith.constant 0 : index
    %49 = vector.load %arg3[%c2, %c0_17, %c0_18] : memref<3x96x32xbf16, #tpu.memory_space<vmem>>, vector<1x96x32xbf16>
    %50 = vector.shape_cast %49 : vector<1x96x32xbf16> to vector<96x32xbf16>
    %cst_19 = arith.constant dense<0.000000e+00> : vector<128x32xf32>
    %51 = tpu.matmul %48, %50, %cst_19 {dimension_numbers = #tpu.dot_dimension_numbers<[1], [0], [0], [1], [0, 0, 1, 1], [], []>} : vector<128x96xbf16>, vector<96x32xbf16>, vector<128x32xf32> -> vector<128x32xf32>
    %52 = arith.addf %40, %51 : vector<128x32xf32>
    %c1_20 = arith.constant 1 : index
    %c0_21 = arith.constant 0 : index
    %53 = vector.load %arg6[%c1_20, %c0_21] : memref<4x32xf32, #tpu.memory_space<vmem>>, vector<1x32xf32>
    %54 = vector.broadcast %53 : vector<1x32xf32> to vector<128x32xf32>
    %55 = arith.addf %52, %54 : vector<128x32xf32>
    %c1_22 = arith.constant 1 : index
    %56 = memref.load %arg7[%c1_22] : memref<4xf32, #tpu.memory_space<smem>>
    %cst_23 = arith.constant 0.000000e+00 : f32
    %57 = vector.broadcast %cst_23 : f32 to vector<128x32xf32>
    %58 = arith.cmpf oge, %55, %57 : vector<128x32xf32>
    %59 = vector.broadcast %56 : f32 to vector<128x32xf32>
    %60 = arith.mulf %59, %55 : vector<128x32xf32>
    %61 = arith.select %58, %55, %60 : vector<128x32xi1>, vector<128x32xf32>
    %62 = vector.shape_cast %61 : vector<128x32xf32> to vector<4x32x32xf32>
    %63 = vector.extract_strided_slice %62 {offsets = [0, 0, 0], sizes = [4, 16, 32], strides = [1, 1, 1]} : vector<4x32x32xf32> to vector<4x16x32xf32>
    %64 = vector.extract_strided_slice %62 {offsets = [0, 16, 0], sizes = [4, 16, 32], strides = [1, 1, 1]} : vector<4x32x32xf32> to vector<4x16x32xf32>
    %65 = arith.maximumf %63, %64 : vector<4x16x32xf32>
    %66 = arith.truncf %65 : vector<4x16x32xf32> to vector<4x16x32xbf16>
    %cst_24 = arith.constant 0.000000e+00 : bf16
    %67 = vector.broadcast %cst_24 : bf16 to vector<1x16x32xbf16>
    %cst_25 = arith.constant 0.000000e+00 : bf16
    %68 = vector.broadcast %cst_25 : bf16 to vector<4x1x32xbf16>
    %69 = vector.extract_strided_slice %66 {offsets = [0, 0, 0], sizes = [3, 16, 32], strides = [1, 1, 1]} : vector<4x16x32xbf16> to vector<3x16x32xbf16>
    %70 = tpu.concatenate %67, %69 in 0 : vector<1x16x32xbf16>, vector<3x16x32xbf16> -> vector<4x16x32xbf16>
    %71 = tpu.concatenate %68, %70, %68 in 1 : vector<4x1x32xbf16>, vector<4x16x32xbf16>, vector<4x1x32xbf16> -> vector<4x18x32xbf16>
    %72 = vector.extract_strided_slice %71 {offsets = [0, 0, 0], sizes = [4, 16, 32], strides = [1, 1, 1]} : vector<4x18x32xbf16> to vector<4x16x32xbf16>
    %73 = vector.extract_strided_slice %71 {offsets = [0, 1, 0], sizes = [4, 16, 32], strides = [1, 1, 1]} : vector<4x18x32xbf16> to vector<4x16x32xbf16>
    %74 = vector.extract_strided_slice %71 {offsets = [0, 2, 0], sizes = [4, 16, 32], strides = [1, 1, 1]} : vector<4x18x32xbf16> to vector<4x16x32xbf16>
    %75 = tpu.concatenate %72, %73, %74 in 2 : vector<4x16x32xbf16>, vector<4x16x32xbf16>, vector<4x16x32xbf16> -> vector<4x16x96xbf16>
    %76 = vector.shape_cast %75 : vector<4x16x96xbf16> to vector<64x96xbf16>
    %c0_26 = arith.constant 0 : index
    %c0_27 = arith.constant 0 : index
    %c0_28 = arith.constant 0 : index
    %77 = vector.load %arg4[%c0_26, %c0_27, %c0_28] : memref<3x96x32xbf16, #tpu.memory_space<vmem>>, vector<1x96x32xbf16>
    %78 = vector.shape_cast %77 : vector<1x96x32xbf16> to vector<96x32xbf16>
    %cst_29 = arith.constant dense<0.000000e+00> : vector<64x32xf32>
    %79 = tpu.matmul %76, %78, %cst_29 {dimension_numbers = #tpu.dot_dimension_numbers<[1], [0], [0], [1], [0, 0, 1, 1], [], []>} : vector<64x96xbf16>, vector<96x32xbf16>, vector<64x32xf32> -> vector<64x32xf32>
    %80 = tpu.concatenate %68, %66, %68 in 1 : vector<4x1x32xbf16>, vector<4x16x32xbf16>, vector<4x1x32xbf16> -> vector<4x18x32xbf16>
    %81 = vector.extract_strided_slice %80 {offsets = [0, 0, 0], sizes = [4, 16, 32], strides = [1, 1, 1]} : vector<4x18x32xbf16> to vector<4x16x32xbf16>
    %82 = vector.extract_strided_slice %80 {offsets = [0, 1, 0], sizes = [4, 16, 32], strides = [1, 1, 1]} : vector<4x18x32xbf16> to vector<4x16x32xbf16>
    %83 = vector.extract_strided_slice %80 {offsets = [0, 2, 0], sizes = [4, 16, 32], strides = [1, 1, 1]} : vector<4x18x32xbf16> to vector<4x16x32xbf16>
    %84 = tpu.concatenate %81, %82, %83 in 2 : vector<4x16x32xbf16>, vector<4x16x32xbf16>, vector<4x16x32xbf16> -> vector<4x16x96xbf16>
    %85 = vector.shape_cast %84 : vector<4x16x96xbf16> to vector<64x96xbf16>
    %c1_30 = arith.constant 1 : index
    %c0_31 = arith.constant 0 : index
    %c0_32 = arith.constant 0 : index
    %86 = vector.load %arg4[%c1_30, %c0_31, %c0_32] : memref<3x96x32xbf16, #tpu.memory_space<vmem>>, vector<1x96x32xbf16>
    %87 = vector.shape_cast %86 : vector<1x96x32xbf16> to vector<96x32xbf16>
    %cst_33 = arith.constant dense<0.000000e+00> : vector<64x32xf32>
    %88 = tpu.matmul %85, %87, %cst_33 {dimension_numbers = #tpu.dot_dimension_numbers<[1], [0], [0], [1], [0, 0, 1, 1], [], []>} : vector<64x96xbf16>, vector<96x32xbf16>, vector<64x32xf32> -> vector<64x32xf32>
    %89 = arith.addf %79, %88 : vector<64x32xf32>
    %90 = vector.extract_strided_slice %66 {offsets = [1, 0, 0], sizes = [3, 16, 32], strides = [1, 1, 1]} : vector<4x16x32xbf16> to vector<3x16x32xbf16>
    %91 = tpu.concatenate %90, %67 in 0 : vector<3x16x32xbf16>, vector<1x16x32xbf16> -> vector<4x16x32xbf16>
    %92 = tpu.concatenate %68, %91, %68 in 1 : vector<4x1x32xbf16>, vector<4x16x32xbf16>, vector<4x1x32xbf16> -> vector<4x18x32xbf16>
    %93 = vector.extract_strided_slice %92 {offsets = [0, 0, 0], sizes = [4, 16, 32], strides = [1, 1, 1]} : vector<4x18x32xbf16> to vector<4x16x32xbf16>
    %94 = vector.extract_strided_slice %92 {offsets = [0, 1, 0], sizes = [4, 16, 32], strides = [1, 1, 1]} : vector<4x18x32xbf16> to vector<4x16x32xbf16>
    %95 = vector.extract_strided_slice %92 {offsets = [0, 2, 0], sizes = [4, 16, 32], strides = [1, 1, 1]} : vector<4x18x32xbf16> to vector<4x16x32xbf16>
    %96 = tpu.concatenate %93, %94, %95 in 2 : vector<4x16x32xbf16>, vector<4x16x32xbf16>, vector<4x16x32xbf16> -> vector<4x16x96xbf16>
    %97 = vector.shape_cast %96 : vector<4x16x96xbf16> to vector<64x96xbf16>
    %c2_34 = arith.constant 2 : index
    %c0_35 = arith.constant 0 : index
    %c0_36 = arith.constant 0 : index
    %98 = vector.load %arg4[%c2_34, %c0_35, %c0_36] : memref<3x96x32xbf16, #tpu.memory_space<vmem>>, vector<1x96x32xbf16>
    %99 = vector.shape_cast %98 : vector<1x96x32xbf16> to vector<96x32xbf16>
    %cst_37 = arith.constant dense<0.000000e+00> : vector<64x32xf32>
    %100 = tpu.matmul %97, %99, %cst_37 {dimension_numbers = #tpu.dot_dimension_numbers<[1], [0], [0], [1], [0, 0, 1, 1], [], []>} : vector<64x96xbf16>, vector<96x32xbf16>, vector<64x32xf32> -> vector<64x32xf32>
    %101 = arith.addf %89, %100 : vector<64x32xf32>
    %c2_38 = arith.constant 2 : index
    %c0_39 = arith.constant 0 : index
    %102 = vector.load %arg6[%c2_38, %c0_39] : memref<4x32xf32, #tpu.memory_space<vmem>>, vector<1x32xf32>
    %103 = vector.broadcast %102 : vector<1x32xf32> to vector<64x32xf32>
    %104 = arith.addf %101, %103 : vector<64x32xf32>
    %c2_40 = arith.constant 2 : index
    %105 = memref.load %arg7[%c2_40] : memref<4xf32, #tpu.memory_space<smem>>
    %cst_41 = arith.constant 0.000000e+00 : f32
    %106 = vector.broadcast %cst_41 : f32 to vector<64x32xf32>
    %107 = arith.cmpf oge, %104, %106 : vector<64x32xf32>
    %108 = vector.broadcast %105 : f32 to vector<64x32xf32>
    %109 = arith.mulf %108, %104 : vector<64x32xf32>
    %110 = arith.select %107, %104, %109 : vector<64x32xi1>, vector<64x32xf32>
    %111 = vector.shape_cast %110 : vector<64x32xf32> to vector<2x32x32xf32>
    %112 = vector.extract_strided_slice %111 {offsets = [0, 0, 0], sizes = [2, 16, 32], strides = [1, 1, 1]} : vector<2x32x32xf32> to vector<2x16x32xf32>
    %113 = vector.extract_strided_slice %111 {offsets = [0, 16, 0], sizes = [2, 16, 32], strides = [1, 1, 1]} : vector<2x32x32xf32> to vector<2x16x32xf32>
    %114 = arith.maximumf %112, %113 : vector<2x16x32xf32>
    %115 = arith.truncf %114 : vector<2x16x32xf32> to vector<2x16x32xbf16>
    %cst_42 = arith.constant 0.000000e+00 : bf16
    %116 = vector.broadcast %cst_42 : bf16 to vector<1x16x32xbf16>
    %cst_43 = arith.constant 0.000000e+00 : bf16
    %117 = vector.broadcast %cst_43 : bf16 to vector<2x1x32xbf16>
    %118 = vector.extract_strided_slice %115 {offsets = [0, 0, 0], sizes = [1, 16, 32], strides = [1, 1, 1]} : vector<2x16x32xbf16> to vector<1x16x32xbf16>
    %119 = tpu.concatenate %116, %118 in 0 : vector<1x16x32xbf16>, vector<1x16x32xbf16> -> vector<2x16x32xbf16>
    %120 = tpu.concatenate %117, %119, %117 in 1 : vector<2x1x32xbf16>, vector<2x16x32xbf16>, vector<2x1x32xbf16> -> vector<2x18x32xbf16>
    %121 = vector.extract_strided_slice %120 {offsets = [0, 0, 0], sizes = [2, 16, 32], strides = [1, 1, 1]} : vector<2x18x32xbf16> to vector<2x16x32xbf16>
    %122 = vector.extract_strided_slice %120 {offsets = [0, 1, 0], sizes = [2, 16, 32], strides = [1, 1, 1]} : vector<2x18x32xbf16> to vector<2x16x32xbf16>
    %123 = vector.extract_strided_slice %120 {offsets = [0, 2, 0], sizes = [2, 16, 32], strides = [1, 1, 1]} : vector<2x18x32xbf16> to vector<2x16x32xbf16>
    %124 = tpu.concatenate %121, %122, %123 in 2 : vector<2x16x32xbf16>, vector<2x16x32xbf16>, vector<2x16x32xbf16> -> vector<2x16x96xbf16>
    %125 = vector.shape_cast %124 : vector<2x16x96xbf16> to vector<32x96xbf16>
    %c0_44 = arith.constant 0 : index
    %c0_45 = arith.constant 0 : index
    %c0_46 = arith.constant 0 : index
    %126 = vector.load %arg5[%c0_44, %c0_45, %c0_46] : memref<3x96x32xbf16, #tpu.memory_space<vmem>>, vector<1x96x32xbf16>
    %127 = vector.shape_cast %126 : vector<1x96x32xbf16> to vector<96x32xbf16>
    %cst_47 = arith.constant dense<0.000000e+00> : vector<32x32xf32>
    %128 = tpu.matmul %125, %127, %cst_47 {dimension_numbers = #tpu.dot_dimension_numbers<[1], [0], [0], [1], [0, 0, 1, 1], [], []>} : vector<32x96xbf16>, vector<96x32xbf16>, vector<32x32xf32> -> vector<32x32xf32>
    %129 = tpu.concatenate %117, %115, %117 in 1 : vector<2x1x32xbf16>, vector<2x16x32xbf16>, vector<2x1x32xbf16> -> vector<2x18x32xbf16>
    %130 = vector.extract_strided_slice %129 {offsets = [0, 0, 0], sizes = [2, 16, 32], strides = [1, 1, 1]} : vector<2x18x32xbf16> to vector<2x16x32xbf16>
    %131 = vector.extract_strided_slice %129 {offsets = [0, 1, 0], sizes = [2, 16, 32], strides = [1, 1, 1]} : vector<2x18x32xbf16> to vector<2x16x32xbf16>
    %132 = vector.extract_strided_slice %129 {offsets = [0, 2, 0], sizes = [2, 16, 32], strides = [1, 1, 1]} : vector<2x18x32xbf16> to vector<2x16x32xbf16>
    %133 = tpu.concatenate %130, %131, %132 in 2 : vector<2x16x32xbf16>, vector<2x16x32xbf16>, vector<2x16x32xbf16> -> vector<2x16x96xbf16>
    %134 = vector.shape_cast %133 : vector<2x16x96xbf16> to vector<32x96xbf16>
    %c1_48 = arith.constant 1 : index
    %c0_49 = arith.constant 0 : index
    %c0_50 = arith.constant 0 : index
    %135 = vector.load %arg5[%c1_48, %c0_49, %c0_50] : memref<3x96x32xbf16, #tpu.memory_space<vmem>>, vector<1x96x32xbf16>
    %136 = vector.shape_cast %135 : vector<1x96x32xbf16> to vector<96x32xbf16>
    %cst_51 = arith.constant dense<0.000000e+00> : vector<32x32xf32>
    %137 = tpu.matmul %134, %136, %cst_51 {dimension_numbers = #tpu.dot_dimension_numbers<[1], [0], [0], [1], [0, 0, 1, 1], [], []>} : vector<32x96xbf16>, vector<96x32xbf16>, vector<32x32xf32> -> vector<32x32xf32>
    %138 = arith.addf %128, %137 : vector<32x32xf32>
    %139 = vector.extract_strided_slice %115 {offsets = [1, 0, 0], sizes = [1, 16, 32], strides = [1, 1, 1]} : vector<2x16x32xbf16> to vector<1x16x32xbf16>
    %140 = tpu.concatenate %139, %116 in 0 : vector<1x16x32xbf16>, vector<1x16x32xbf16> -> vector<2x16x32xbf16>
    %141 = tpu.concatenate %117, %140, %117 in 1 : vector<2x1x32xbf16>, vector<2x16x32xbf16>, vector<2x1x32xbf16> -> vector<2x18x32xbf16>
    %142 = vector.extract_strided_slice %141 {offsets = [0, 0, 0], sizes = [2, 16, 32], strides = [1, 1, 1]} : vector<2x18x32xbf16> to vector<2x16x32xbf16>
    %143 = vector.extract_strided_slice %141 {offsets = [0, 1, 0], sizes = [2, 16, 32], strides = [1, 1, 1]} : vector<2x18x32xbf16> to vector<2x16x32xbf16>
    %144 = vector.extract_strided_slice %141 {offsets = [0, 2, 0], sizes = [2, 16, 32], strides = [1, 1, 1]} : vector<2x18x32xbf16> to vector<2x16x32xbf16>
    %145 = tpu.concatenate %142, %143, %144 in 2 : vector<2x16x32xbf16>, vector<2x16x32xbf16>, vector<2x16x32xbf16> -> vector<2x16x96xbf16>
    %146 = vector.shape_cast %145 : vector<2x16x96xbf16> to vector<32x96xbf16>
    %c2_52 = arith.constant 2 : index
    %c0_53 = arith.constant 0 : index
    %c0_54 = arith.constant 0 : index
    %147 = vector.load %arg5[%c2_52, %c0_53, %c0_54] : memref<3x96x32xbf16, #tpu.memory_space<vmem>>, vector<1x96x32xbf16>
    %148 = vector.shape_cast %147 : vector<1x96x32xbf16> to vector<96x32xbf16>
    %cst_55 = arith.constant dense<0.000000e+00> : vector<32x32xf32>
    %149 = tpu.matmul %146, %148, %cst_55 {dimension_numbers = #tpu.dot_dimension_numbers<[1], [0], [0], [1], [0, 0, 1, 1], [], []>} : vector<32x96xbf16>, vector<96x32xbf16>, vector<32x32xf32> -> vector<32x32xf32>
    %150 = arith.addf %138, %149 : vector<32x32xf32>
    %c3 = arith.constant 3 : index
    %c0_56 = arith.constant 0 : index
    %151 = vector.load %arg6[%c3, %c0_56] : memref<4x32xf32, #tpu.memory_space<vmem>>, vector<1x32xf32>
    %152 = vector.broadcast %151 : vector<1x32xf32> to vector<32x32xf32>
    %153 = arith.addf %150, %152 : vector<32x32xf32>
    %c3_57 = arith.constant 3 : index
    %154 = memref.load %arg7[%c3_57] : memref<4xf32, #tpu.memory_space<smem>>
    %cst_58 = arith.constant 0.000000e+00 : f32
    %155 = vector.broadcast %cst_58 : f32 to vector<32x32xf32>
    %156 = arith.cmpf oge, %153, %155 : vector<32x32xf32>
    %157 = vector.broadcast %154 : f32 to vector<32x32xf32>
    %158 = arith.mulf %157, %153 : vector<32x32xf32>
    %159 = arith.select %156, %153, %158 : vector<32x32xi1>, vector<32x32xf32>
    %160 = vector.shape_cast %159 : vector<32x32xf32> to vector<1x32x32xf32>
    %161 = vector.extract_strided_slice %160 {offsets = [0, 0, 0], sizes = [1, 16, 32], strides = [1, 1, 1]} : vector<1x32x32xf32> to vector<1x16x32xf32>
    %162 = vector.extract_strided_slice %160 {offsets = [0, 16, 0], sizes = [1, 16, 32], strides = [1, 1, 1]} : vector<1x32x32xf32> to vector<1x16x32xf32>
    %163 = arith.maximumf %161, %162 : vector<1x16x32xf32>
    %c0_59 = arith.constant 0 : index
    %c0_60 = arith.constant 0 : index
    %c0_61 = arith.constant 0 : index
    %c0_62 = arith.constant 0 : index
    %164 = vector.load %arg8[%c0_59, %c0_60, %c0_61, %c0_62] : memref<1x1x16x32xf32, #tpu.memory_space<vmem>>, vector<1x1x16x32xf32>
    %165 = vector.shape_cast %164 : vector<1x1x16x32xf32> to vector<1x16x32xf32>
    %166 = vector.shape_cast %163 : vector<1x16x32xf32> to vector<1x1x16x32xf32>
    tpu.vector_store %arg8[%c0_59, %c0_60, %c0_61, %c0_62], %166 {strides = array<i32>} : memref<1x1x16x32xf32, #tpu.memory_space<vmem>>, vector<1x1x16x32xf32>,
    return
  }
  func.func @transform_0(%arg0: i32) -> (i32, i32, i32) {
    %c0_i32 = arith.constant 0 : i32
    %c0_i32_0 = arith.constant 0 : i32
    %c0_i32_1 = arith.constant 0 : i32
    return %arg0, %c0_i32, %c0_i32_0 : i32, i32, i32
  }
  func.func @transform_1(%arg0: i32) -> (i32, i32) {
    %c0_i32 = arith.constant 0 : i32
    %c0_i32_0 = arith.constant 0 : i32
    %c0_i32_1 = arith.constant 0 : i32
    return %c0_i32, %c0_i32_0 : i32, i32
  }
  func.func @transform_2(%arg0: i32) -> (i32, i32, i32) {
    %c0_i32 = arith.constant 0 : i32
    %c0_i32_0 = arith.constant 0 : i32
    %c0_i32_1 = arith.constant 0 : i32
    %c0_i32_2 = arith.constant 0 : i32
    return %c0_i32, %c0_i32_0, %c0_i32_1 : i32, i32, i32
  }
  func.func @transform_3(%arg0: i32) -> (i32, i32, i32) {
    %c0_i32 = arith.constant 0 : i32
    %c0_i32_0 = arith.constant 0 : i32
    %c0_i32_1 = arith.constant 0 : i32
    %c0_i32_2 = arith.constant 0 : i32
    return %c0_i32, %c0_i32_0, %c0_i32_1 : i32, i32, i32
  }
  func.func @transform_4(%arg0: i32) -> (i32, i32, i32) {
    %c0_i32 = arith.constant 0 : i32
    %c0_i32_0 = arith.constant 0 : i32
    %c0_i32_1 = arith.constant 0 : i32
    %c0_i32_2 = arith.constant 0 : i32
    return %c0_i32, %c0_i32_0, %c0_i32_1 : i32, i32, i32
  }
  func.func @transform_5(%arg0: i32) -> (i32, i32) {
    %c0_i32 = arith.constant 0 : i32
    %c0_i32_0 = arith.constant 0 : i32
    %c0_i32_1 = arith.constant 0 : i32
    return %c0_i32, %c0_i32_0 : i32, i32
  }
  func.func @transform_6(%arg0: i32) -> i32 {
    %c0_i32 = arith.constant 0 : i32
    %c0_i32_0 = arith.constant 0 : i32
    return %c0_i32 : i32
  }
  func.func @transform_7(%arg0: i32) -> (i32, i32, i32, i32) {
    %c0_i32 = arith.constant 0 : i32
    %c0_i32_0 = arith.constant 0 : i32
    %c0_i32_1 = arith.constant 0 : i32
    %c0_i32_2 = arith.constant 0 : i32
    return %arg0, %c0_i32, %c0_i32_0, %c0_i32_1 : i32, i32, i32, i32
  }
}

</mosaic_0001>

<llo_original>
// kernel: cnn_embedder.1
$region0: #{cnn_embedder.1}
  #allocation0 [shape = 'u32[]', space=smem, size = 0x4, offset = 0x4, fixed_abs, tag = 'smem constant byte address 0x4 - core index']
  #allocation1 [shape = 'u32[144,128]{1,0:T(1,128)}', space=vmem, size = 0x12000, scoped, tag = 'internal scratch']
  %s0 = inlined_call_operand.vmem [shape: bf16[2,256,36], index: 0, kind: input, shape index: {}]
  %s1 = inlined_call_operand.vmem [shape: bf16[36,32], index: 1, kind: input, shape index: {}]
  %s2 = inlined_call_operand.vmem [shape: bf16[3,96,32], index: 2, kind: input, shape index: {}]
  %s3 = inlined_call_operand.vmem [shape: bf16[3,96,32], index: 3, kind: input, shape index: {}]
  %s4 = inlined_call_operand.vmem [shape: bf16[3,96,32], index: 4, kind: input, shape index: {}]
  %s5 = inlined_call_operand.vmem [shape: f32[4,32], index: 5, kind: input, shape index: {}]
  %s6 = inlined_call_operand.vmem [shape: f32[4], index: 6, kind: input, shape index: {}]
  %s7 = inlined_call_operand.hbm [shape: f32[2,1,16,32], index: 7, kind: output, shape index: {}]
  %s8 = sld [smem:[#allocation0]]
  $region65: #{cnn_embedder.1} parent=0
    _
  %s10 = ssub.s32 1, %s8
  %s11 = scalar_select 0, %s10, %s8
  $region1: #{cnn_embedder.1} parent=0
    #allocation2 [shape = 'u8[512]{0}', space=smem, size = 0x200, scoped, tag = 'input window, operand 6, single buffered']
    #allocation3 [shape = 's32[2]{0}', space=sflag, size = 0x8, scoped, tag = 'scoped memory for cnn_embedder.1']
    #allocation4 [shape = 's32[2]{0}', space=sflag, size = 0x8, scoped, tag = 'scoped memory for cnn_embedder.1']
    #allocation5 [shape = 'u8[16384]{0}', space=vmem, size = 0x4000, scoped, tag = 'output window, operand 0']
    %12 = vsyncpa [#allocation4], 0
    %13 = vsyncpa [#allocation3], 0
    %s14 = scalar_lea.sflag [#allocation3], 1
    %15 = vsyncpa %s14, 0
    loop: start=0, step=1, limit=4
    $region2: #{cnn_embedder.1} parent=1 // loop_pre_header
      _
    $region3: #{cnn_embedder.1} parent=1 // loop_header
      %s17 = sphi 0, %s21
      %p18 = scmp.ge.s32.totalorder %s17, 4
      %s27 = sphi 0, %s29
      %s30 = sphi 0, %s27
      %s31 = sphi 0, %s30
      %s47 = sphi 0, %s31
      %s51 = sphi 0, %s51
      %s53 = sphi 0, %s51
      %s54 = sphi 0, %s53
      %s68 = sphi 0, %s54
      %s72 = sphi 0, %s72
      %s74 = sphi 0, %s72
      %s75 = sphi 0, %s74
      %s89 = sphi 0, %s75
      %s93 = sphi 0, %s93
      %s95 = sphi 0, %s93
      %s96 = sphi 0, %s95
      %s110 = sphi 0, %s96
      %s114 = sphi 0, %s114
      %s116 = sphi 0, %s114
      %s117 = sphi 0, %s116
      %s131 = sphi 0, %s117
      %s135 = sphi 0, %s135
      %s137 = sphi 0, %s135
      %s138 = sphi 0, %s137
      %s152 = sphi 0, %s138
      %s156 = sphi 0, %s156
      %s158 = sphi 0, %s156
      %s159 = sphi 0, %s158
      %s173 = sphi 0, %s159
      %s179 = sphi 0, %s181
      %s182 = sphi 0, %s179
      %s183 = sphi 0, %s182
      %s199 = sphi 0, %s183
    $region4: #{cnn_embedder.1} parent=1 // loop_header_branch
      %20 = sbr.rel (%p18) target = $region8
    $region5: #{cnn_embedder.1} parent=1 // loop_body
      %s22 = ssub.s32 %s17, 1
      %s23 = ssub.s32 %s17, 2
      %s24 = sadd.s32 %s17, 1
      %s25 = ssub.s32 %s17, %s24
      %p26 = scmp.eq.s32.totalorder %s25, 0
      %s28 = sadd.s32 %s27, 1
      %s29 = scalar_select %p26, %s27, %s28
      %p32 = pneg %p26
      %p33 = scmp.eq.s32.totalorder %s17, 1
      %p34 = por %p32, %p33
      %p35 = scmp.ne.s32.totalorder %s27, %s30
      %p36 = scmp.eq.s32.totalorder %s17, 0
      %p37 = por %p35, %p36
      %p38 = scmp.ne.s32.totalorder %s27, %s30
      %p39 = scmp.eq.s32.totalorder %s22, 1
      %p40 = por %p38, %p39
      %p41 = scmp.ne.s32.totalorder %s30, %s31
      %p42 = scmp.eq.s32.totalorder %s22, 0
      %p43 = por %p41, %p42
      %p44 = scmp.ne.s32.totalorder %s30, %s31
      %p45 = scmp.eq.s32.totalorder %s23, 1
      %p46 = por %p44, %p45
      %p48 = scmp.ne.s32.totalorder %s31, %s47
      %p49 = scmp.eq.s32.totalorder %s23, 0
      %p50 = por %p48, %p49
      %s52 = sadd.s32 %s51, 1
      %p55 = scmp.eq.s32.totalorder %s17, 1
      %p56 = scmp.ne.s32.totalorder %s51, %s53
      %p57 = scmp.eq.s32.totalorder %s17, 0
      %p58 = por %p56, %p57
      %p59 = scmp.ne.s32.totalorder %s51, %s53
      %p60 = scmp.eq.s32.totalorder %s22, 1
      %p61 = por %p59, %p60
      %p62 = scmp.ne.s32.totalorder %s53, %s54
      %p63 = scmp.eq.s32.totalorder %s22, 0
      %p64 = por %p62, %p63
      %p65 = scmp.ne.s32.totalorder %s53, %s54
      %p66 = scmp.eq.s32.totalorder %s23, 1
      %p67 = por %p65, %p66
      %p69 = scmp.ne.s32.totalorder %s54, %s68
      %p70 = scmp.eq.s32.totalorder %s23, 0
      %p71 = por %p69, %p70
      %s73 = sadd.s32 %s72, 1
      %p76 = scmp.eq.s32.totalorder %s17, 1
      %p77 = scmp.ne.s32.totalorder %s72, %s74
      %p78 = scmp.eq.s32.totalorder %s17, 0
      %p79 = por %p77, %p78
      %p80 = scmp.ne.s32.totalorder %s72, %s74
      %p81 = scmp.eq.s32.totalorder %s22, 1
      %p82 = por %p80, %p81
      %p83 = scmp.ne.s32.totalorder %s74, %s75
      %p84 = scmp.eq.s32.totalorder %s22, 0
      %p85 = por %p83, %p84
      %p86 = scmp.ne.s32.totalorder %s74, %s75
      %p87 = scmp.eq.s32.totalorder %s23, 1
      %p88 = por %p86, %p87
      %p90 = scmp.ne.s32.totalorder %s75, %s89
      %p91 = scmp.eq.s32.totalorder %s23, 0
      %p92 = por %p90, %p91
      %s94 = sadd.s32 %s93, 1
      %p97 = scmp.eq.s32.totalorder %s17, 1
      %p98 = scmp.ne.s32.totalorder %s93, %s95
      %p99 = scmp.eq.s32.totalorder %s17, 0
      %p100 = por %p98, %p99
      %p101 = scmp.ne.s32.totalorder %s93, %s95
      %p102 = scmp.eq.s32.totalorder %s22, 1
      %p103 = por %p101, %p102
      %p104 = scmp.ne.s32.totalorder %s95, %s96
      %p105 = scmp.eq.s32.totalorder %s22, 0
      %p106 = por %p104, %p105
      %p107 = scmp.ne.s32.totalorder %s95, %s96
      %p108 = scmp.eq.s32.totalorder %s23, 1
      %p109 = por %p107, %p108
      %p111 = scmp.ne.s32.totalorder %s96, %s110
      %p112 = scmp.eq.s32.totalorder %s23, 0
      %p113 = por %p111, %p112
      %s115 = sadd.s32 %s114, 1
      %p118 = scmp.eq.s32.totalorder %s17, 1
      %p119 = scmp.ne.s32.totalorder %s114, %s116
      %p120 = scmp.eq.s32.totalorder %s17, 0
      %p121 = por %p119, %p120
      %p122 = scmp.ne.s32.totalorder %s114, %s116
      %p123 = scmp.eq.s32.totalorder %s22, 1
      %p124 = por %p122, %p123
      %p125 = scmp.ne.s32.totalorder %s116, %s117
      %p126 = scmp.eq.s32.totalorder %s22, 0
      %p127 = por %p125, %p126
      %p128 = scmp.ne.s32.totalorder %s116, %s117
      %p129 = scmp.eq.s32.totalorder %s23, 1
      %p130 = por %p128, %p129
      %p132 = scmp.ne.s32.totalorder %s117, %s131
      %p133 = scmp.eq.s32.totalorder %s23, 0
      %p134 = por %p132, %p133
      %s136 = sadd.s32 %s135, 1
      %p139 = scmp.eq.s32.totalorder %s17, 1
      %p140 = scmp.ne.s32.totalorder %s135, %s137
      %p141 = scmp.eq.s32.totalorder %s17, 0
      %p142 = por %p140, %p141
      %p143 = scmp.ne.s32.totalorder %s135, %s137
      %p144 = scmp.eq.s32.totalorder %s22, 1
      %p145 = por %p143, %p144
      %p146 = scmp.ne.s32.totalorder %s137, %s138
      %p147 = scmp.eq.s32.totalorder %s22, 0
      %p148 = por %p146, %p147
      %p149 = scmp.ne.s32.totalorder %s137, %s138
      %p150 = scmp.eq.s32.totalorder %s23, 1
      %p151 = por %p149, %p150
      %p153 = scmp.ne.s32.totalorder %s138, %s152
      %p154 = scmp.eq.s32.totalorder %s23, 0
      %p155 = por %p153, %p154
      %s157 = sadd.s32 %s156, 1
      %p160 = scmp.eq.s32.totalorder %s17, 1
      %p161 = scmp.ne.s32.totalorder %s156, %s158
      %p162 = scmp.eq.s32.totalorder %s17, 0
      %p163 = por %p161, %p162
      %p164 = scmp.ne.s32.totalorder %s156, %s158
      %p165 = scmp.eq.s32.totalorder %s22, 1
      %p166 = por %p164, %p165
      %p167 = scmp.ne.s32.totalorder %s158, %s159
      %p168 = scmp.eq.s32.totalorder %s22, 0
      %p169 = por %p167, %p168
      %p170 = scmp.ne.s32.totalorder %s158, %s159
      %p171 = scmp.eq.s32.totalorder %s23, 1
      %p172 = por %p170, %p171
      %p174 = scmp.ne.s32.totalorder %s159, %s173
      %p175 = scmp.eq.s32.totalorder %s23, 0
      %p176 = por %p174, %p175
      %s177 = ssub.s32 %s17, %s24
      %p178 = scmp.eq.s32.totalorder %s177, 0
      %s180 = sadd.s32 %s179, 1
      %s181 = scalar_select %p178, %s179, %s180
      %p184 = pneg %p178
      %p185 = scmp.eq.s32.totalorder %s17, 1
      %p186 = por %p184, %p185
      %p187 = scmp.ne.s32.totalorder %s179, %s182
      %p188 = scmp.eq.s32.totalorder %s17, 0
      %p189 = por %p187, %p188
      %p190 = scmp.ne.s32.totalorder %s179, %s182
      %p191 = scmp.eq.s32.totalorder %s22, 1
      %p192 = por %p190, %p191
      %p193 = scmp.ne.s32.totalorder %s182, %s183
      %p194 = scmp.eq.s32.totalorder %s22, 0
      %p195 = por %p193, %p194
      %p196 = scmp.ne.s32.totalorder %s182, %s183
      %p197 = scmp.eq.s32.totalorder %s23, 1
      %p198 = por %p196, %p197
      %p200 = scmp.ne.s32.totalorder %s183, %s199
      %p201 = scmp.eq.s32.totalorder %s23, 0
      %p202 = por %p200, %p201
      %p203 = scmp.le.s32.totalorder 1, %s17
      %p204 = scmp.lt.s32.totalorder %s17, 3
      %p205 = pnand %p203, %p204
      %p206 = pneg %p205
      // Predicated region
      $region9: #{cnn_embedder.1} parent=5 // pred_check
        _
      $region10: #{cnn_embedder.1} parent=5 // pred_check_branch
        %208 = sbr.rel (%p205) target = $region12
      $region11: #{cnn_embedder.1} parent=5 // pred_region
        %s209 = ssub.s32 %s17, 1
        // Predicated region
        $region13: #{cnn_embedder.1} parent=11 // pred_check
          %p210 = pneg %p64
        $region14: #{cnn_embedder.1} parent=11 // pred_check_branch
          %212 = sbr.rel (%p210) target = $region16
        $region15: #{cnn_embedder.1} parent=11 // pred_region
          _
        $region16: #{cnn_embedder.1} parent=11 // pred_fallthru
          _
        // Predicated region
        $region17: #{cnn_embedder.1} parent=11 // pred_check
          %p213 = pneg %p85
        $region18: #{cnn_embedder.1} parent=11 // pred_check_branch
          %215 = sbr.rel (%p213) target = $region20
        $region19: #{cnn_embedder.1} parent=11 // pred_region
          _
        $region20: #{cnn_embedder.1} parent=11 // pred_fallthru
          _
        // Predicated region
        $region21: #{cnn_embedder.1} parent=11 // pred_check
          %p216 = pneg %p106
        $region22: #{cnn_embedder.1} parent=11 // pred_check_branch
          %218 = sbr.rel (%p216) target = $region24
        $region23: #{cnn_embedder.1} parent=11 // pred_region
          _
        $region24: #{cnn_embedder.1} parent=11 // pred_fallthru
          _
        // Predicated region
        $region25: #{cnn_embedder.1} parent=11 // pred_check
          %p219 = pneg %p127
        $region26: #{cnn_embedder.1} parent=11 // pred_check_branch
          %221 = sbr.rel (%p219) target = $region28
        $region27: #{cnn_embedder.1} parent=11 // pred_region
          _
        $region28: #{cnn_embedder.1} parent=11 // pred_fallthru
          _
        // Predicated region
        $region29: #{cnn_embedder.1} parent=11 // pred_check
          %p222 = pneg %p148
        $region30: #{cnn_embedder.1} parent=11 // pred_check_branch
          %224 = sbr.rel (%p222) target = $region32
        $region31: #{cnn_embedder.1} parent=11 // pred_region
          _
        $region32: #{cnn_embedder.1} parent=11 // pred_fallthru
          _
        // Predicated region
        $region33: #{cnn_embedder.1} parent=11 // pred_check
          %p225 = pneg %p169
        $region34: #{cnn_embedder.1} parent=11 // pred_check_branch
          %227 = sbr.rel (%p225) target = $region36
        $region35: #{cnn_embedder.1} parent=11 // pred_region
          %s229 = ssub.s32 16, 16
          %230 = vsyncadd [#allocation4], %s229
          %s232 = sshll.u32 %s6, 4
          %s233 = int_to_ptr.vmem [resolvable:$true] %s232
          %235 = dma.vmem_to_smem %s233, 16, [#allocation2], [#allocation4]
        $region36: #{cnn_embedder.1} parent=11 // pred_fallthru
          _
      $region12: #{cnn_embedder.1} parent=5 // pred_fallthru
        _
      %p236 = scmp.lt.s32.totalorder %s17, 2
      // Predicated region
      $region37: #{cnn_embedder.1} parent=5 // pred_check
        %p237 = pneg %p236
      $region38: #{cnn_embedder.1} parent=5 // pred_check_branch
        %239 = sbr.rel (%p237) target = $region40
      $region39: #{cnn_embedder.1} parent=5 // pred_region
        // Predicated region
        $region41: #{cnn_embedder.1} parent=39 // pred_check
          %p240 = pneg %p37
        $region42: #{cnn_embedder.1} parent=39 // pred_check_branch
          %242 = sbr.rel (%p240) target = $region44
        $region43: #{cnn_embedder.1} parent=39 // pred_region
          %p243 = scmp.lt.s32.totalorder %s17, 1
          %s244 = scalar_select %p243, %s17, 1
          %s245 = smul.addr %s244, 32
          %s246 = smul.addr %s245, 4
          %s247 = scalar_lea.vmem %s0, %s246
        $region44: #{cnn_embedder.1} parent=39 // pred_fallthru
          _
      $region40: #{cnn_embedder.1} parent=5 // pred_fallthru
        _
      %p248 = scmp.le.s32.totalorder 1, %s17
      %p249 = scmp.lt.s32.totalorder %s17, 3
      %p250 = pnand %p248, %p249
      %p251 = pneg %p250
      // Predicated region
      $region45: #{cnn_embedder.1} parent=5 // pred_check
        _
      $region46: #{cnn_embedder.1} parent=5 // pred_check_branch
        %253 = sbr.rel (%p250) target = $region48
      $region47: #{cnn_embedder.1} parent=5 // pred_region
        %s254 = ssub.s32 %s17, 1
        // Predicated region
        $region49: #{cnn_embedder.1} parent=47 // pred_check
          %p255 = pneg %p169
        $region50: #{cnn_embedder.1} parent=47 // pred_check_branch
          %257 = sbr.rel (%p255) target = $region52
        $region51: #{cnn_embedder.1} parent=47 // pred_region
          %258 = dma.done [#allocation4], 16
        $region52: #{cnn_embedder.1} parent=47 // pred_fallthru
          _
        %259 = sfence
        %p260 = scmp.lt.s32.totalorder %s22, 1
        %s261 = scalar_select %p260, %s22, 1
        %s262 = smul.addr %s261, 32
        %s263 = smul.addr %s262, 4
        %s264 = scalar_lea.vmem %s0, %s263
        %p265 = pneg %p43
        %p266 = pneg %p40
        %p267 = pneg %p64
        %p268 = pneg %p61
        %p269 = pneg %p85
        %p270 = pneg %p82
        %p271 = pneg %p106
        %p272 = pneg %p103
        %p273 = pneg %p127
        %p274 = pneg %p124
        %p275 = pneg %p148
        %p276 = pneg %p145
        %p277 = pneg %p169
        %p278 = pneg %p166
        %p279 = pneg %p195
        %p280 = pneg %p192
        %s281 = sand.u32 %s182, 1
        %s282 = scalar_lea.sflag [#allocation3], %s281
        %s283 = sand.u32 %s182, 1
        %s284 = smul.addr %s283, 16
        %s285 = scalar_lea.vmem [#allocation5], %s284
        %p286 = scmp.lt.s32.totalorder %s22, 1
        %s287 = scalar_select %p286, %s22, 1
        %s288 = smul.addr %s287, 32
        %s289 = smul.addr %s288, 4
        %s290 = scalar_lea.vmem %s0, %s289
        %v292 = vld [vmem:[%s290] sm:$0xf]
        %v293 = vld [vmem:[%s290 + $0x4] sm:$0xf]
        %v294 = vld [vmem:[%s290 + $0x8] sm:$0xf]
        %v295 = vld [vmem:[%s290 + $0xc] sm:$0xf]
        %v296 = vld [vmem:[%s290 + $0x10] sm:$0xf]
        %v297 = vld [vmem:[%s290 + $0x14] sm:$0xf]
        %v298 = vld [vmem:[%s290 + $0x18] sm:$0xf]
        %v299 = vld [vmem:[%s290 + $0x1c] sm:$0xf]
        %v300 = vld [vmem:[%s290 + $0x20] sm:$0xf]
        %v301 = vld [vmem:[%s290 + $0x24] sm:$0xf]
        %v302 = vld [vmem:[%s290 + $0x28] sm:$0xf]
        %v303 = vld [vmem:[%s290 + $0x2c] sm:$0xf]
        %v304 = vld [vmem:[%s290 + $0x30] sm:$0xf]
        %v305 = vld [vmem:[%s290 + $0x34] sm:$0xf]
        %v306 = vld [vmem:[%s290 + $0x38] sm:$0xf]
        %v307 = vld [vmem:[%s290 + $0x3c] sm:$0xf]
        %v308 = vld [vmem:[%s290 + $0x40] sm:$0xf]
        %v309 = vld [vmem:[%s290 + $0x44] sm:$0xf]
        %v310 = vld [vmem:[%s290 + $0x48] sm:$0xf]
        %v311 = vld [vmem:[%s290 + $0x4c] sm:$0xf]
        %v312 = vld [vmem:[%s290 + $0x50] sm:$0xf]
        %v313 = vld [vmem:[%s290 + $0x54] sm:$0xf]
        %v314 = vld [vmem:[%s290 + $0x58] sm:$0xf]
        %v315 = vld [vmem:[%s290 + $0x5c] sm:$0xf]
        %v316 = vld [vmem:[%s290 + $0x60] sm:$0xf]
        %v317 = vld [vmem:[%s290 + $0x64] sm:$0xf]
        %v318 = vld [vmem:[%s290 + $0x68] sm:$0xf]
        %v319 = vld [vmem:[%s290 + $0x6c] sm:$0xf]
        %v320 = vld [vmem:[%s290 + $0x70] sm:$0xf]
        %v321 = vld [vmem:[%s290 + $0x74] sm:$0xf]
        %v322 = vld [vmem:[%s290 + $0x78] sm:$0xf]
        %v323 = vld [vmem:[%s290 + $0x7c] sm:$0xf]
        %v324 = vld [vmem:[%s1] sm:$0xf]
        %v325 = vld [vmem:[%s1 + $0x4] sm:$0xf]
        %v326 = vld [vmem:[%s1 + $0x8] sm:$0xf]
        %v327 = vld [vmem:[%s1 + $0xc] sm:$0xf]
        %v328 = vld [vmem:[%s1 + $0x10] sm:$0x3]
        %v329 = vld [vmem:[%s5] sm:$0x1]
        %v330 = vlaneseq
        %v331 = vshrl.u32 %v330, 7
        %v332 = vsub.s32 0, %v331
        %v333 = vrot.slane %v329, %v332
        %v366 = vunpack.c.l.b16 %v292
        %v367 = vunpack.c.l.b16 %v293
        %v368 = vunpack.c.l.b16 %v294
        %v369 = vunpack.c.l.b16 %v295
        %v370 = vunpack.c.l.b16 %v296
        %v371 = vunpack.c.l.b16 %v297
        %v372 = vunpack.c.l.b16 %v298
        %v373 = vunpack.c.l.b16 %v299
        %v374 = vunpack.c.l.b16 %v300
        %v375 = vunpack.c.l.b16 %v301
        %v376 = vunpack.c.l.b16 %v302
        %v377 = vunpack.c.l.b16 %v303
        %v378 = vunpack.c.l.b16 %v304
        %v379 = vunpack.c.l.b16 %v305
        %v380 = vunpack.c.l.b16 %v306
        %v381 = vunpack.c.l.b16 %v307
        %v382 = vunpack.c.l.b16 %v308
        %v383 = vunpack.c.l.b16 %v309
        %v384 = vunpack.c.l.b16 %v310
        %v385 = vunpack.c.l.b16 %v311
        %v386 = vunpack.c.l.b16 %v312
        %v387 = vunpack.c.l.b16 %v313
        %v388 = vunpack.c.l.b16 %v314
        %v389 = vunpack.c.l.b16 %v315
        %v390 = vunpack.c.l.b16 %v316
        %v391 = vunpack.c.l.b16 %v317
        %v392 = vunpack.c.l.b16 %v318
        %v393 = vunpack.c.l.b16 %v319
        %v394 = vunpack.c.l.b16 %v320
        %v395 = vunpack.c.l.b16 %v321
        %v396 = vunpack.c.l.b16 %v322
        %v397 = vunpack.c.l.b16 %v323
        %v398 = vpack.c.b16 %v367, %v366
        %v399 = vpack.c.b16 %v369, %v368
        %v400 = vpack.c.b16 %v371, %v370
        %v401 = vpack.c.b16 %v373, %v372
        %v402 = vpack.c.b16 %v375, %v374
        %v403 = vpack.c.b16 %v377, %v376
        %v404 = vpack.c.b16 %v379, %v378
        %v405 = vpack.c.b16 %v381, %v380
        %v406 = vpack.c.b16 %v383, %v382
        %v407 = vpack.c.b16 %v385, %v384
        %v408 = vpack.c.b16 %v387, %v386
        %v409 = vpack.c.b16 %v389, %v388
        %v410 = vpack.c.b16 %v391, %v390
        %v411 = vpack.c.b16 %v393, %v392
        %v412 = vpack.c.b16 %v395, %v394
        %v413 = vpack.c.b16 %v397, %v396
        %v419 = vunpack.c.l.b16 %v324
        %v420 = vunpack.c.l.b16 %v325
        %v421 = vunpack.c.l.b16 %v326
        %v422 = vunpack.c.l.b16 %v327
        %v423 = vunpack.c.l.b16 %v328
        %v424 = vpack.c.b16 %v420, %v419
        %v425 = vpack.c.b16 %v422, %v421
        %v426 = vpack.c.b16 %v423, %v423
        %vm429 = vcmask 293888
        %v431 = vsel %vm429, %v398, 0
        %v434 = vsel %vm429, %v399, 0
        %v437 = vsel %vm429, %v400, 0
        %v440 = vsel %vm429, %v401, 0
        %v443 = vsel %vm429, %v402, 0
        %v446 = vsel %vm429, %v403, 0
        %v449 = vsel %vm429, %v404, 0
        %v452 = vsel %vm429, %v405, 0
        %v455 = vsel %vm429, %v406, 0
        %v458 = vsel %vm429, %v407, 0
        %v461 = vsel %vm429, %v408, 0
        %v464 = vsel %vm429, %v409, 0
        %v467 = vsel %vm429, %v410, 0
        %v470 = vsel %vm429, %v411, 0
        %v473 = vsel %vm429, %v412, 0
        %v476 = vsel %vm429, %v413, 0
        %vm478 = vcmask 1041408
        %v480 = vsel %vm478, %v426, 0
        %482 = vmatprep.subr.bf16.mxu0 0
        %483 = vmatpush1.bf16.msra.mxu0 %v424
        %484 = vmatprep.subr.bf16.mxu0 0
        %485 = vmatpush1.bf16.msra.mxu0 %v425
        %486 = vmatprep.subr.bf16.mxu0 0
        %487 = vmatpush1.bf16.msra.mxu0 %v480
        %488 = vmatprep.subr.bf16.mxu0 0
        %489 = vmatpush1.bf16.msra.mxu0 0
        %490 = vmatprep.subr.bf16.mxu0 0
        %491 = vmatpush1.bf16.msra.mxu0 0
        %492 = vmatprep.subr.bf16.mxu0 0
        %493 = vmatpush1.bf16.msra.mxu0 0
        %494 = vmatprep.subr.bf16.mxu0 0
        %495 = vmatpush1.bf16.msra.mxu0 0
        %496 = vmatprep.subr.bf16.mxu0 0
        %497 = vmatpush1.bf16.msra.mxu0 0
        %498 = vmatprep.subr.bf16.mxu0 0
        %499 = vmatpush1.bf16.msra.mxu0 0
        %500 = vmatprep.subr.bf16.mxu0 0
        %501 = vmatpush1.bf16.msra.mxu0 0
        %502 = vmatprep.subr.bf16.mxu0 0
        %503 = vmatpush1.bf16.msra.mxu0 0
        %504 = vmatprep.subr.bf16.mxu0 0
        %505 = vmatpush1.bf16.msra.mxu0 0
        %506 = vmatprep.subr.bf16.mxu0 0
        %507 = vmatpush1.bf16.msra.mxu0 0
        %508 = vmatprep.subr.bf16.mxu0 0
        %509 = vmatpush1.bf16.msra.mxu0 0
        %510 = vmatprep.subr.bf16.mxu0 0
        %511 = vmatpush1.bf16.msra.mxu0 0
        %512 = vmatprep.subr.bf16.mxu0 0
        %513 = vmatpush1.bf16.msra.mxu0 0
        %514 = vmatprep.mubr.bf16.mxu0 0
        %515 = vmatmul.mubr.bf16.gmra.mrb[0].mxu0 %v431
        %v516 = vpop.f32.mrb[0].mxu0
        %v517 = vadd.f32 %v333, %v516
        %v518 = vpop.f32.mrb[0].mxu0
        %v519 = vpop.f32.mrb[0].mxu0
        %v520 = vadd.f32 %v333, %v519
        %v521 = vpop.f32.mrb[0].mxu0
        %522 = vmatprep.mubr.bf16.mxu0 0
        %523 = vmatmul.mubr.bf16.gmra.mrb[0].mxu0 %v434
        %v524 = vpop.f32.mrb[0].mxu0
        %v525 = vadd.f32 %v333, %v524
        %v526 = vpop.f32.mrb[0].mxu0
        %v527 = vpop.f32.mrb[0].mxu0
        %v528 = vadd.f32 %v333, %v527
        %v529 = vpop.f32.mrb[0].mxu0
        %530 = vmatprep.mubr.bf16.mxu0 0
        %531 = vmatmul.mubr.bf16.gmra.mrb[0].mxu0 %v437
        %v532 = vpop.f32.mrb[0].mxu0
        %v533 = vadd.f32 %v333, %v532
        %v534 = vpop.f32.mrb[0].mxu0
        %v535 = vpop.f32.mrb[0].mxu0
        %v536 = vadd.f32 %v333, %v535
        %v537 = vpop.f32.mrb[0].mxu0
        %538 = vmatprep.mubr.bf16.mxu0 0
        %539 = vmatmul.mubr.bf16.gmra.mrb[0].mxu0 %v440
        %v540 = vpop.f32.mrb[0].mxu0
        %v541 = vadd.f32 %v333, %v540
        %v542 = vpop.f32.mrb[0].mxu0
        %v543 = vpop.f32.mrb[0].mxu0
        %v544 = vadd.f32 %v333, %v543
        %v545 = vpop.f32.mrb[0].mxu0
        %546 = vmatprep.mubr.bf16.mxu0 0
        %547 = vmatmul.mubr.bf16.gmra.mrb[0].mxu0 %v443
        %v548 = vpop.f32.mrb[0].mxu0
        %v549 = vadd.f32 %v333, %v548
        %v550 = vpop.f32.mrb[0].mxu0
        %v551 = vpop.f32.mrb[0].mxu0
        %v552 = vadd.f32 %v333, %v551
        %v553 = vpop.f32.mrb[0].mxu0
        %554 = vmatprep.mubr.bf16.mxu0 0
        %555 = vmatmul.mubr.bf16.gmra.mrb[0].mxu0 %v446
        %v556 = vpop.f32.mrb[0].mxu0
        %v557 = vadd.f32 %v333, %v556
        %v558 = vpop.f32.mrb[0].mxu0
        %v559 = vpop.f32.mrb[0].mxu0
        %v560 = vadd.f32 %v333, %v559
        %v561 = vpop.f32.mrb[0].mxu0
        %562 = vmatprep.mubr.bf16.mxu0 0
        %563 = vmatmul.mubr.bf16.gmra.mrb[0].mxu0 %v449
        %v564 = vpop.f32.mrb[0].mxu0
        %v565 = vadd.f32 %v333, %v564
        %v566 = vpop.f32.mrb[0].mxu0
        %v567 = vpop.f32.mrb[0].mxu0
        %v568 = vadd.f32 %v333, %v567
        %v569 = vpop.f32.mrb[0].mxu0
        %570 = vmatprep.mubr.bf16.mxu0 0
        %571 = vmatmul.mubr.bf16.gmra.mrb[0].mxu0 %v452
        %v572 = vpop.f32.mrb[0].mxu0
        %v573 = vadd.f32 %v333, %v572
        %v574 = vpop.f32.mrb[0].mxu0
        %v575 = vpop.f32.mrb[0].mxu0
        %v576 = vadd.f32 %v333, %v575
        %v577 = vpop.f32.mrb[0].mxu0
        %578 = vmatprep.mubr.bf16.mxu0 0
        %579 = vmatmul.mubr.bf16.gmra.mrb[0].mxu0 %v455
        %v580 = vpop.f32.mrb[0].mxu0
        %v581 = vadd.f32 %v333, %v580
        %v582 = vpop.f32.mrb[0].mxu0
        %v583 = vpop.f32.mrb[0].mxu0
        %v584 = vadd.f32 %v333, %v583
        %v585 = vpop.f32.mrb[0].mxu0
        %586 = vmatprep.mubr.bf16.mxu0 0
        %587 = vmatmul.mubr.bf16.gmra.mrb[0].mxu0 %v458
        %v588 = vpop.f32.mrb[0].mxu0
        %v589 = vadd.f32 %v333, %v588
        %v590 = vpop.f32.mrb[0].mxu0
        %v591 = vpop.f32.mrb[0].mxu0
        %v592 = vadd.f32 %v333, %v591
        %v593 = vpop.f32.mrb[0].mxu0
        %594 = vmatprep.mubr.bf16.mxu0 0
        %595 = vmatmul.mubr.bf16.gmra.mrb[0].mxu0 %v461
        %v596 = vpop.f32.mrb[0].mxu0
        %v597 = vadd.f32 %v333, %v596
        %v598 = vpop.f32.mrb[0].mxu0
        %v599 = vpop.f32.mrb[0].mxu0
        %v600 = vadd.f32 %v333, %v599
        %v601 = vpop.f32.mrb[0].mxu0
        %602 = vmatprep.mubr.bf16.mxu0 0
        %603 = vmatmul.mubr.bf16.gmra.mrb[0].mxu0 %v464
        %v604 = vpop.f32.mrb[0].mxu0
        %v605 = vadd.f32 %v333, %v604
        %v606 = vpop.f32.mrb[0].mxu0
        %v607 = vpop.f32.mrb[0].mxu0
        %v608 = vadd.f32 %v333, %v607
        %v609 = vpop.f32.mrb[0].mxu0
        %610 = vmatprep.mubr.bf16.mxu0 0
        %611 = vmatmul.mubr.bf16.gmra.mrb[0].mxu0 %v467
        %v612 = vpop.f32.mrb[0].mxu0
        %v613 = vadd.f32 %v333, %v612
        %v614 = vpop.f32.mrb[0].mxu0
        %v615 = vpop.f32.mrb[0].mxu0
        %v616 = vadd.f32 %v333, %v615
        %v617 = vpop.f32.mrb[0].mxu0
        %618 = vmatprep.mubr.bf16.mxu0 0
        %619 = vmatmul.mubr.bf16.gmra.mrb[0].mxu0 %v470
        %v620 = vpop.f32.mrb[0].mxu0
        %v621 = vadd.f32 %v333, %v620
        %v622 = vpop.f32.mrb[0].mxu0
        %v623 = vpop.f32.mrb[0].mxu0
        %v624 = vadd.f32 %v333, %v623
        %v625 = vpop.f32.mrb[0].mxu0
        %626 = vmatprep.mubr.bf16.mxu0 0
        %627 = vmatmul.mubr.bf16.gmra.mrb[0].mxu0 %v473
        %v628 = vpop.f32.mrb[0].mxu0
        %v629 = vadd.f32 %v333, %v628
        %v630 = vpop.f32.mrb[0].mxu0
        %v631 = vpop.f32.mrb[0].mxu0
        %v632 = vadd.f32 %v333, %v631
        %v633 = vpop.f32.mrb[0].mxu0
        %634 = vmatprep.mubr.bf16.mxu0 0
        %635 = vmatmul.mubr.bf16.gmra.mrb[0].mxu0 %v476
        %v636 = vpop.f32.mrb[0].mxu0
        %v637 = vadd.f32 %v333, %v636
        %v638 = vpop.f32.mrb[0].mxu0
        %v639 = vpop.f32.mrb[0].mxu0
        %v640 = vadd.f32 %v333, %v639
        %v641 = vpop.f32.mrb[0].mxu0
        %642 = vdwg.mxu0
        %s643 = sld [smem:[#allocation2]]
        %vm644 = vcmp.ge.f32.partialorder %v517, 0.0
        %vm645 = vcmp.ge.f32.partialorder %v520, 0.0
        %vm646 = vcmp.ge.f32.partialorder %v525, 0.0
        %vm647 = vcmp.ge.f32.partialorder %v528, 0.0
        %vm648 = vcmp.ge.f32.partialorder %v533, 0.0
        %vm649 = vcmp.ge.f32.partialorder %v536, 0.0
        %vm650 = vcmp.ge.f32.partialorder %v541, 0.0
        %vm651 = vcmp.ge.f32.partialorder %v544, 0.0
        %vm652 = vcmp.ge.f32.partialorder %v549, 0.0
        %vm653 = vcmp.ge.f32.partialorder %v552, 0.0
        %vm654 = vcmp.ge.f32.partialorder %v557, 0.0
        %vm655 = vcmp.ge.f32.partialorder %v560, 0.0
        %vm656 = vcmp.ge.f32.partialorder %v565, 0.0
        %vm657 = vcmp.ge.f32.partialorder %v568, 0.0
        %vm658 = vcmp.ge.f32.partialorder %v573, 0.0
        %vm659 = vcmp.ge.f32.partialorder %v576, 0.0
        %vm660 = vcmp.ge.f32.partialorder %v581, 0.0
        %vm661 = vcmp.ge.f32.partialorder %v584, 0.0
        %vm662 = vcmp.ge.f32.partialorder %v589, 0.0
        %vm663 = vcmp.ge.f32.partialorder %v592, 0.0
        %vm664 = vcmp.ge.f32.partialorder %v597, 0.0
        %vm665 = vcmp.ge.f32.partialorder %v600, 0.0
        %vm666 = vcmp.ge.f32.partialorder %v605, 0.0
        %vm667 = vcmp.ge.f32.partialorder %v608, 0.0
        %vm668 = vcmp.ge.f32.partialorder %v613, 0.0
        %vm669 = vcmp.ge.f32.partialorder %v616, 0.0
        %vm670 = vcmp.ge.f32.partialorder %v621, 0.0
        %vm671 = vcmp.ge.f32.partialorder %v624, 0.0
        %vm672 = vcmp.ge.f32.partialorder %v629, 0.0
        %vm673 = vcmp.ge.f32.partialorder %v632, 0.0
        %vm674 = vcmp.ge.f32.partialorder %v637, 0.0
        %vm675 = vcmp.ge.f32.partialorder %v640, 0.0
        %v676 = vstv %s643
        %v677 = vmul.f32 %v676, %v517
        %v678 = vmul.f32 %v676, %v520
        %v679 = vmul.f32 %v676, %v525
        %v680 = vmul.f32 %v676, %v528
        %v681 = vmul.f32 %v676, %v533
        %v682 = vmul.f32 %v676, %v536
        %v683 = vmul.f32 %v676, %v541
        %v684 = vmul.f32 %v676, %v544
        %v685 = vmul.f32 %v676, %v549
        %v686 = vmul.f32 %v676, %v552
        %v687 = vmul.f32 %v676, %v557
        %v688 = vmul.f32 %v676, %v560
        %v689 = vmul.f32 %v676, %v565
        %v690 = vmul.f32 %v676, %v568
        %v691 = vmul.f32 %v676, %v573
        %v692 = vmul.f32 %v676, %v576
        %v693 = vmul.f32 %v676, %v581
        %v694 = vmul.f32 %v676, %v584
        %v695 = vmul.f32 %v676, %v589
        %v696 = vmul.f32 %v676, %v592
        %v697 = vmul.f32 %v676, %v597
        %v698 = vmul.f32 %v676, %v600
        %v699 = vmul.f32 %v676, %v605
        %v700 = vmul.f32 %v676, %v608
        %v701 = vmul.f32 %v676, %v613
        %v702 = vmul.f32 %v676, %v616
        %v703 = vmul.f32 %v676, %v621
        %v704 = vmul.f32 %v676, %v624
        %v705 = vmul.f32 %v676, %v629
        %v706 = vmul.f32 %v676, %v632
        %v707 = vmul.f32 %v676, %v637
        %v708 = vmul.f32 %v676, %v640
        %v709 = vsel %vm644, %v517, %v677
        %v710 = vsel %vm645, %v520, %v678
        %v711 = vsel %vm646, %v525, %v679
        %v712 = vsel %vm647, %v528, %v680
        %v713 = vsel %vm648, %v533, %v681
        %v714 = vsel %vm649, %v536, %v682
        %v715 = vsel %vm650, %v541, %v683
        %v716 = vsel %vm651, %v544, %v684
        %v717 = vsel %vm652, %v549, %v685
        %v718 = vsel %vm653, %v552, %v686
        %v719 = vsel %vm654, %v557, %v687
        %v720 = vsel %vm655, %v560, %v688
        %v721 = vsel %vm656, %v565, %v689
        %v722 = vsel %vm657, %v568, %v690
        %v723 = vsel %vm658, %v573, %v691
        %v724 = vsel %vm659, %v576, %v692
        %v725 = vsel %vm660, %v581, %v693
        %v726 = vsel %vm661, %v584, %v694
        %v727 = vsel %vm662, %v589, %v695
        %v728 = vsel %vm663, %v592, %v696
        %v729 = vsel %vm664, %v597, %v697
        %v730 = vsel %vm665, %v600, %v698
        %v731 = vsel %vm666, %v605, %v699
        %v732 = vsel %vm667, %v608, %v700
        %v733 = vsel %vm668, %v613, %v701
        %v734 = vsel %vm669, %v616, %v702
        %v735 = vsel %vm670, %v621, %v703
        %v736 = vsel %vm671, %v624, %v704
        %v737 = vsel %vm672, %v629, %v705
        %v738 = vsel %vm673, %v632, %v706
        %v739 = vsel %vm674, %v637, %v707
        %v740 = vsel %vm675, %v640, %v708
        %v741 = vmax.f32 %v709, %v711
        %v742 = vmax.f32 %v710, %v712
        %v743 = vmax.f32 %v713, %v715
        %v744 = vmax.f32 %v714, %v716
        %v745 = vmax.f32 %v717, %v719
        %v746 = vmax.f32 %v718, %v720
        %v747 = vmax.f32 %v721, %v723
        %v748 = vmax.f32 %v722, %v724
        %v749 = vmax.f32 %v725, %v727
        %v750 = vmax.f32 %v726, %v728
        %v751 = vmax.f32 %v729, %v731
        %v752 = vmax.f32 %v730, %v732
        %v753 = vmax.f32 %v733, %v735
        %v754 = vmax.f32 %v734, %v736
        %v755 = vmax.f32 %v737, %v739
        %v756 = vmax.f32 %v738, %v740
        %v757 = vpack.c.bf16 %v742, %v741
        %v758 = vpack.c.bf16 %v744, %v743
        %v759 = vpack.c.bf16 %v746, %v745
        %v760 = vpack.c.bf16 %v748, %v747
        %v761 = vpack.c.bf16 %v750, %v749
        %v762 = vpack.c.bf16 %v752, %v751
        %v763 = vpack.c.bf16 %v754, %v753
        %v764 = vpack.c.bf16 %v756, %v755
        %v766 = vshrl.u32 0, 16
        %v768 = vrot.slane %v766, 7
        %v769 = vshll.u32 0, 16
        %v771 = vor.u32 %v768, %v769
        %v773 = vshrl.u32 %v757, 16
        %v775 = vrot.slane %v773, 7
        %v776 = vshll.u32 %v757, 16
        %v778 = vor.u32 %v775, %v776
        %v780 = vshrl.u32 %v758, 16
        %v782 = vrot.slane %v780, 7
        %v783 = vshll.u32 %v758, 16
        %v785 = vor.u32 %v782, %v783
        %v787 = vshrl.u32 %v759, 16
        %v789 = vrot.slane %v787, 7
        %v790 = vshll.u32 %v759, 16
        %v792 = vor.u32 %v789, %v790
        %v794 = vshrl.u32 %v760, 16
        %v796 = vrot.slane %v794, 7
        %v797 = vshll.u32 %v760, 16
        %v799 = vor.u32 %v796, %v797
        %v801 = vshrl.u32 %v761, 16
        %v803 = vrot.slane %v801, 7
        %v804 = vshll.u32 %v761, 16
        %v806 = vor.u32 %v803, %v804
        %v808 = vshrl.u32 %v762, 16
        %v810 = vrot.slane %v808, 7
        %v811 = vshll.u32 %v762, 16
        %v813 = vor.u32 %v810, %v811
        %v815 = vshrl.u32 %v763, 16
        %v817 = vrot.slane %v815, 7
        %v818 = vshll.u32 %v763, 16
        %v820 = vor.u32 %v817, %v818
        %vm837 = vcmask 1040384
        %vm838 = vsmask.f32 256
        %vm839 = vmand %vm837, %vm838
        %v840 = vsel %vm839, 0, %v771
        %v841 = vsel %vm839, 0, %v778
        %v842 = vsel %vm839, 0, %v785
        %v843 = vsel %vm839, 0, %v792
        %v844 = vsel %vm839, 0, %v799
        %v845 = vsel %vm839, 0, %v806
        %v846 = vsel %vm839, 0, %v813
        %v847 = vsel %vm839, 0, %v820
        %v848 = vsel %vm839, %v768, 0
        %v849 = vsel %vm839, %v775, 0
        %v850 = vsel %vm839, %v782, 0
        %v851 = vsel %vm839, %v789, 0
        %v852 = vsel %vm839, %v796, 0
        %v853 = vsel %vm839, %v803, 0
        %v854 = vsel %vm839, %v810, 0
        %v855 = vsel %vm839, %v817, 0
        %vm856 = vsmask.f32 7424
        %v858 = vshrl.u32 %v840, 16
        %v860 = vshll.u32 %v840, 16
        %v862 = vrot.slane %v860, 1
        %v863 = vor.u32 %v858, %v862
        %v865 = vshll.u32 %v848, 16
        %v867 = vrot.slane %v865, 1
        %v868 = vsel %vm856, %v863, %v867
        %v870 = vshrl.u32 %v841, 16
        %v872 = vshll.u32 %v841, 16
        %v874 = vrot.slane %v872, 1
        %v875 = vor.u32 %v870, %v874
        %v877 = vshll.u32 %v849, 16
        %v879 = vrot.slane %v877, 1
        %v880 = vsel %vm856, %v875, %v879
        %v882 = vshrl.u32 %v842, 16
        %v884 = vshll.u32 %v842, 16
        %v886 = vrot.slane %v884, 1
        %v887 = vor.u32 %v882, %v886
        %v889 = vshll.u32 %v850, 16
        %v891 = vrot.slane %v889, 1
        %v892 = vsel %vm856, %v887, %v891
        %v894 = vshrl.u32 %v843, 16
        %v896 = vshll.u32 %v843, 16
        %v898 = vrot.slane %v896, 1
        %v899 = vor.u32 %v894, %v898
        %v901 = vshll.u32 %v851, 16
        %v903 = vrot.slane %v901, 1
        %v904 = vsel %vm856, %v899, %v903
        %v906 = vshrl.u32 %v844, 16
        %v908 = vshll.u32 %v844, 16
        %v910 = vrot.slane %v908, 1
        %v911 = vor.u32 %v906, %v910
        %v913 = vshll.u32 %v852, 16
        %v915 = vrot.slane %v913, 1
        %v916 = vsel %vm856, %v911, %v915
        %v918 = vshrl.u32 %v845, 16
        %v920 = vshll.u32 %v845, 16
        %v922 = vrot.slane %v920, 1
        %v923 = vor.u32 %v918, %v922
        %v925 = vshll.u32 %v853, 16
        %v927 = vrot.slane %v925, 1
        %v928 = vsel %vm856, %v923, %v927
        %v930 = vshrl.u32 %v846, 16
        %v932 = vshll.u32 %v846, 16
        %v934 = vrot.slane %v932, 1
        %v935 = vor.u32 %v930, %v934
        %v937 = vshll.u32 %v854, 16
        %v939 = vrot.slane %v937, 1
        %v940 = vsel %vm856, %v935, %v939
        %v942 = vshrl.u32 %v847, 16
        %v944 = vshll.u32 %v847, 16
        %v946 = vrot.slane %v944, 1
        %v947 = vor.u32 %v942, %v946
        %v949 = vshll.u32 %v855, 16
        %v951 = vrot.slane %v949, 1
        %v952 = vsel %vm856, %v947, %v951
        %953 = vrot.lane.b32.xlu0 %v868, 32
        %v954 = vpop.permute.xlu0 %953
        %955 = vrot.lane.b32.xlu0 %v880, 32
        %v956 = vpop.permute.xlu0 %955
        %957 = vrot.lane.b32.xlu0 %v892, 32
        %v958 = vpop.permute.xlu0 %957
        %959 = vrot.lane.b32.xlu0 %v904, 32
        %v960 = vpop.permute.xlu0 %959
        %961 = vrot.lane.b32.xlu0 %v916, 32
        %v962 = vpop.permute.xlu0 %961
        %963 = vrot.lane.b32.xlu0 %v928, 32
        %v964 = vpop.permute.xlu0 %963
        %965 = vrot.lane.b32.xlu0 %v940, 32
        %v966 = vpop.permute.xlu0 %965
        %967 = vrot.lane.b32.xlu0 %v952, 32
        %v968 = vpop.permute.xlu0 %967
        %vm985 = vcmask 1046528
        %v986 = vrot.slane %v840, 1
        %v987 = vrot.slane %v848, 1
        %v988 = vsel %vm985, %v986, %v987
        %v989 = vrot.slane %v841, 1
        %v990 = vrot.slane %v849, 1
        %v991 = vsel %vm985, %v989, %v990
        %v992 = vrot.slane %v842, 1
        %v993 = vrot.slane %v850, 1
        %v994 = vsel %vm985, %v992, %v993
        %v995 = vrot.slane %v843, 1
        %v996 = vrot.slane %v851, 1
        %v997 = vsel %vm985, %v995, %v996
        %v998 = vrot.slane %v844, 1
        %v999 = vrot.slane %v852, 1
        %v1000 = vsel %vm985, %v998, %v999
        %v1001 = vrot.slane %v845, 1
        %v1002 = vrot.slane %v853, 1
        %v1003 = vsel %vm985, %v1001, %v1002
        %v1004 = vrot.slane %v846, 1
        %v1005 = vrot.slane %v854, 1
        %v1006 = vsel %vm985, %v1004, %v1005
        %v1007 = vrot.slane %v847, 1
        %v1008 = vrot.slane %v855, 1
        %v1009 = vsel %vm985, %v1007, %v1008
        %1010 = vrot.lane.b32.xlu0 %v988, 64
        %v1011 = vpop.permute.xlu0 %1010
        %1012 = vrot.lane.b32.xlu0 %v991, 64
        %v1013 = vpop.permute.xlu0 %1012
        %1014 = vrot.lane.b32.xlu0 %v994, 64
        %v1015 = vpop.permute.xlu0 %1014
        %1016 = vrot.lane.b32.xlu0 %v997, 64
        %v1017 = vpop.permute.xlu0 %1016
        %1018 = vrot.lane.b32.xlu0 %v1000, 64
        %v1019 = vpop.permute.xlu0 %1018
        %1020 = vrot.lane.b32.xlu0 %v1003, 64
        %v1021 = vpop.permute.xlu0 %1020
        %1022 = vrot.lane.b32.xlu0 %v1006, 64
        %v1023 = vpop.permute.xlu0 %1022
        %1024 = vrot.lane.b32.xlu0 %v1009, 64
        %v1025 = vpop.permute.xlu0 %1024
        %vm1026 = vcmask 261120
        %v1028 = vsel %vm1026, %v840, %v954
        %v1030 = vsel %vm1026, %v841, %v956
        %v1032 = vsel %vm1026, %v842, %v958
        %v1034 = vsel %vm1026, %v843, %v960
        %v1036 = vsel %vm1026, %v844, %v962
        %v1038 = vsel %vm1026, %v845, %v964
        %v1040 = vsel %vm1026, %v846, %v966
        %v1042 = vsel %vm1026, %v847, %v968
        %vm1043 = vcmask 523264
        %v1045 = vsel %vm1043, %v1028, %v1011
        %v1047 = vsel %vm1043, %v1030, %v1013
        %v1049 = vsel %vm1043, %v1032, %v1015
        %v1051 = vsel %vm1043, %v1034, %v1017
        %v1053 = vsel %vm1043, %v1036, %v1019
        %v1055 = vsel %vm1043, %v1038, %v1021
        %v1057 = vsel %vm1043, %v1040, %v1023
        %v1059 = vsel %vm1043, %v1042, %v1025
        %v1060 = vld [vmem:[%s2] sm:$0xf]
        %v1061 = vld [vmem:[%s2 + $0x4] sm:$0xf]
        %v1062 = vld [vmem:[%s2 + $0x8] sm:$0xf]
        %v1063 = vld [vmem:[%s2 + $0xc] sm:$0xf]
        %v1064 = vld [vmem:[%s2 + $0x10] sm:$0xf]
        %v1065 = vld [vmem:[%s2 + $0x14] sm:$0xf]
        %v1066 = vld [vmem:[%s2 + $0x18] sm:$0xf]
        %v1067 = vld [vmem:[%s2 + $0x1c] sm:$0xf]
        %v1068 = vld [vmem:[%s2 + $0x20] sm:$0xf]
        %v1069 = vld [vmem:[%s2 + $0x24] sm:$0xf]
        %v1070 = vld [vmem:[%s2 + $0x28] sm:$0xf]
        %v1071 = vld [vmem:[%s2 + $0x2c] sm:$0xf]
        %v1073 = vshrl.u32 %v764, 16
        %v1075 = vrot.slane %v1073, 7
        %v1076 = vshll.u32 %v764, 16
        %v1078 = vor.u32 %v1075, %v1076
        %v1081 = vsel %vm839, 0, %v1078
        %v1082 = vsel %vm839, %v1075, 0
        %v1084 = vshrl.u32 %v1081, 16
        %v1086 = vshll.u32 %v1081, 16
        %v1088 = vrot.slane %v1086, 1
        %v1089 = vor.u32 %v1084, %v1088
        %v1091 = vshll.u32 %v1082, 16
        %v1093 = vrot.slane %v1091, 1
        %v1094 = vsel %vm856, %v1089, %v1093
        %1095 = vrot.lane.b32.xlu0 %v1094, 32
        %v1096 = vpop.permute.xlu0 %1095
        %v1099 = vrot.slane %v1081, 1
        %v1100 = vrot.slane %v1082, 1
        %v1101 = vsel %vm985, %v1099, %v1100
        %1102 = vrot.lane.b32.xlu0 %v1101, 64
        %v1103 = vpop.permute.xlu0 %1102
        %v1105 = vsel %vm1026, %v1081, %v1096
        %v1107 = vsel %vm1043, %v1105, %v1103
        %s1108 = scalar_lea.vmem %s2, 48
        %v1109 = vld [vmem:[%s1108] sm:$0xf]
        %v1110 = vld [vmem:[%s1108 + $0x4] sm:$0xf]
        %v1111 = vld [vmem:[%s1108 + $0x8] sm:$0xf]
        %v1112 = vld [vmem:[%s1108 + $0xc] sm:$0xf]
        %v1113 = vld [vmem:[%s1108 + $0x10] sm:$0xf]
        %v1114 = vld [vmem:[%s1108 + $0x14] sm:$0xf]
        %v1115 = vld [vmem:[%s1108 + $0x18] sm:$0xf]
        %v1116 = vld [vmem:[%s1108 + $0x1c] sm:$0xf]
        %v1117 = vld [vmem:[%s1108 + $0x20] sm:$0xf]
        %v1118 = vld [vmem:[%s1108 + $0x24] sm:$0xf]
        %v1119 = vld [vmem:[%s1108 + $0x28] sm:$0xf]
        %v1120 = vld [vmem:[%s1108 + $0x2c] sm:$0xf]
        %v1133 = vunpack.c.l.b16 %v1109
        %v1134 = vunpack.c.l.b16 %v1110
        %v1135 = vunpack.c.l.b16 %v1111
        %v1136 = vunpack.c.l.b16 %v1112
        %v1137 = vunpack.c.l.b16 %v1113
        %v1138 = vunpack.c.l.b16 %v1114
        %v1139 = vunpack.c.l.b16 %v1115
        %v1140 = vunpack.c.l.b16 %v1116
        %v1141 = vunpack.c.l.b16 %v1117
        %v1142 = vunpack.c.l.b16 %v1118
        %v1143 = vunpack.c.l.b16 %v1119
        %v1144 = vunpack.c.l.b16 %v1120
        %v1145 = vpack.c.b16 %v1134, %v1133
        %v1146 = vpack.c.b16 %v1136, %v1135
        %v1147 = vpack.c.b16 %v1138, %v1137
        %v1148 = vpack.c.b16 %v1140, %v1139
        %v1149 = vpack.c.b16 %v1142, %v1141
        %v1150 = vpack.c.b16 %v1144, %v1143
        %vm1157 = vcmask 785408
        %v1158 = vsel %vm1157, %v1047, 0
        %v1160 = vsel %vm1157, %v1049, 0
        %v1162 = vsel %vm1157, %v1051, 0
        %v1164 = vsel %vm1157, %v1053, 0
        %v1166 = vsel %vm1157, %v1055, 0
        %v1168 = vsel %vm1157, %v1057, 0
        %v1170 = vsel %vm1157, %v1059, 0
        %v1172 = vsel %vm1157, %v1107, 0
        %1174 = vmatprep.subr.bf16.mxu0 0
        %1175 = vmatpush1.bf16.msra.mxu0 %v1145
        %1176 = vmatprep.subr.bf16.mxu0 0
        %1177 = vmatpush1.bf16.msra.mxu0 %v1146
        %1178 = vmatprep.subr.bf16.mxu0 0
        %1179 = vmatpush1.bf16.msra.mxu0 %v1147
        %1180 = vmatprep.subr.bf16.mxu0 0
        %1181 = vmatpush1.bf16.msra.mxu0 %v1148
        %1182 = vmatprep.subr.bf16.mxu0 0
        %1183 = vmatpush1.bf16.msra.mxu0 %v1149
        %1184 = vmatprep.subr.bf16.mxu0 0
        %1185 = vmatpush1.bf16.msra.mxu0 %v1150
        %1186 = vmatprep.subr.bf16.mxu0 0
        %1187 = vmatpush1.bf16.msra.mxu0 0
        %1188 = vmatprep.subr.bf16.mxu0 0
        %1189 = vmatpush1.bf16.msra.mxu0 0
        %1190 = vmatprep.subr.bf16.mxu0 0
        %1191 = vmatpush1.bf16.msra.mxu0 0
        %1192 = vmatprep.subr.bf16.mxu0 0
        %1193 = vmatpush1.bf16.msra.mxu0 0
        %1194 = vmatprep.subr.bf16.mxu0 0
        %1195 = vmatpush1.bf16.msra.mxu0 0
        %1196 = vmatprep.subr.bf16.mxu0 0
        %1197 = vmatpush1.bf16.msra.mxu0 0
        %1198 = vmatprep.subr.bf16.mxu0 0
        %1199 = vmatpush1.bf16.msra.mxu0 0
        %1200 = vmatprep.subr.bf16.mxu0 0
        %1201 = vmatpush1.bf16.msra.mxu0 0
        %1202 = vmatprep.subr.bf16.mxu0 0
        %1203 = vmatpush1.bf16.msra.mxu0 0
        %1204 = vmatprep.subr.bf16.mxu0 0
        %1205 = vmatpush1.bf16.msra.mxu0 0
        %1206 = vmatprep.mubr.bf16.mxu0 0
        %1207 = vmatmul.mubr.bf16.gmra.mrb[0].mxu0 %v1158
        %v1208 = vpop.f32.mrb[0].mxu0
        %v1209 = vadd.f32 0.0, %v1208
        %v1210 = vpop.f32.mrb[0].mxu0
        %v1211 = vpop.f32.mrb[0].mxu0
        %v1212 = vadd.f32 0.0, %v1211
        %v1213 = vpop.f32.mrb[0].mxu0
        %1214 = vmatprep.mubr.bf16.mxu0 0
        %1215 = vmatmul.mubr.bf16.gmra.mrb[0].mxu0 %v1160
        %v1216 = vpop.f32.mrb[0].mxu0
        %v1217 = vadd.f32 0.0, %v1216
        %v1218 = vpop.f32.mrb[0].mxu0
        %v1219 = vpop.f32.mrb[0].mxu0
        %v1220 = vadd.f32 0.0, %v1219
        %v1221 = vpop.f32.mrb[0].mxu0
        %1222 = vmatprep.mubr.bf16.mxu0 0
        %1223 = vmatmul.mubr.bf16.gmra.mrb[0].mxu0 %v1162
        %v1224 = vpop.f32.mrb[0].mxu0
        %v1225 = vadd.f32 0.0, %v1224
        %v1226 = vpop.f32.mrb[0].mxu0
        %v1227 = vpop.f32.mrb[0].mxu0
        %v1228 = vadd.f32 0.0, %v1227
        %v1229 = vpop.f32.mrb[0].mxu0
        %1230 = vmatprep.mubr.bf16.mxu0 0
        %1231 = vmatmul.mubr.bf16.gmra.mrb[0].mxu0 %v1164
        %v1232 = vpop.f32.mrb[0].mxu0
        %v1233 = vadd.f32 0.0, %v1232
        %v1234 = vpop.f32.mrb[0].mxu0
        %v1235 = vpop.f32.mrb[0].mxu0
        %v1236 = vadd.f32 0.0, %v1235
        %v1237 = vpop.f32.mrb[0].mxu0
        %1238 = vmatprep.mubr.bf16.mxu0 0
        %1239 = vmatmul.mubr.bf16.gmra.mrb[0].mxu0 %v1166
        %v1240 = vpop.f32.mrb[0].mxu0
        %v1241 = vadd.f32 0.0, %v1240
        %v1242 = vpop.f32.mrb[0].mxu0
        %v1243 = vpop.f32.mrb[0].mxu0
        %v1244 = vadd.f32 0.0, %v1243
        %v1245 = vpop.f32.mrb[0].mxu0
        %1246 = vmatprep.mubr.bf16.mxu0 0
        %1247 = vmatmul.mubr.bf16.gmra.mrb[0].mxu0 %v1168
        %v1248 = vpop.f32.mrb[0].mxu0
        %v1249 = vadd.f32 0.0, %v1248
        %v1250 = vpop.f32.mrb[0].mxu0
        %v1251 = vpop.f32.mrb[0].mxu0
        %v1252 = vadd.f32 0.0, %v1251
        %v1253 = vpop.f32.mrb[0].mxu0
        %1254 = vmatprep.mubr.bf16.mxu0 0
        %1255 = vmatmul.mubr.bf16.gmra.mrb[0].mxu0 %v1170
        %v1256 = vpop.f32.mrb[0].mxu0
        %v1257 = vadd.f32 0.0, %v1256
        %v1258 = vpop.f32.mrb[0].mxu0
        %v1259 = vpop.f32.mrb[0].mxu0
        %v1260 = vadd.f32 0.0, %v1259
        %v1261 = vpop.f32.mrb[0].mxu0
        %1262 = vmatprep.mubr.bf16.mxu0 0
        %1263 = vmatmul.mubr.bf16.gmra.mrb[0].mxu0 %v1172
        %v1264 = vpop.f32.mrb[0].mxu0
        %v1265 = vadd.f32 0.0, %v1264
        %v1266 = vpop.f32.mrb[0].mxu0
        %v1267 = vpop.f32.mrb[0].mxu0
        %v1268 = vadd.f32 0.0, %v1267
        %v1269 = vpop.f32.mrb[0].mxu0
        %1270 = vdwg.mxu0
        %v1283 = vunpack.c.l.b16 %v1060
        %v1284 = vunpack.c.l.b16 %v1061
        %v1285 = vunpack.c.l.b16 %v1062
        %v1286 = vunpack.c.l.b16 %v1063
        %v1287 = vunpack.c.l.b16 %v1064
        %v1288 = vunpack.c.l.b16 %v1065
        %v1289 = vunpack.c.l.b16 %v1066
        %v1290 = vunpack.c.l.b16 %v1067
        %v1291 = vunpack.c.l.b16 %v1068
        %v1292 = vunpack.c.l.b16 %v1069
        %v1293 = vunpack.c.l.b16 %v1070
        %v1294 = vunpack.c.l.b16 %v1071
        %v1295 = vpack.c.b16 %v1284, %v1283
        %v1296 = vpack.c.b16 %v1286, %v1285
        %v1297 = vpack.c.b16 %v1288, %v1287
        %v1298 = vpack.c.b16 %v1290, %v1289
        %v1299 = vpack.c.b16 %v1292, %v1291
        %v1300 = vpack.c.b16 %v1294, %v1293
        %v1307 = vsel %vm1157, %v1045, 0
        %1309 = vmatprep.subr.bf16.mxu0 0
        %1310 = vmatpush1.bf16.msra.mxu0 %v1295
        %1311 = vmatprep.subr.bf16.mxu0 0
        %1312 = vmatpush1.bf16.msra.mxu0 %v1296
        %1313 = vmatprep.subr.bf16.mxu0 0
        %1314 = vmatpush1.bf16.msra.mxu0 %v1297
        %1315 = vmatprep.subr.bf16.mxu0 0
        %1316 = vmatpush1.bf16.msra.mxu0 %v1298
        %1317 = vmatprep.subr.bf16.mxu0 0
        %1318 = vmatpush1.bf16.msra.mxu0 %v1299
        %1319 = vmatprep.subr.bf16.mxu0 0
        %1320 = vmatpush1.bf16.msra.mxu0 %v1300
        %1321 = vmatprep.subr.bf16.mxu0 0
        %1322 = vmatpush1.bf16.msra.mxu0 0
        %1323 = vmatprep.subr.bf16.mxu0 0
        %1324 = vmatpush1.bf16.msra.mxu0 0
        %1325 = vmatprep.subr.bf16.mxu0 0
        %1326 = vmatpush1.bf16.msra.mxu0 0
        %1327 = vmatprep.subr.bf16.mxu0 0
        %1328 = vmatpush1.bf16.msra.mxu0 0
        %1329 = vmatprep.subr.bf16.mxu0 0
        %1330 = vmatpush1.bf16.msra.mxu0 0
        %1331 = vmatprep.subr.bf16.mxu0 0
        %1332 = vmatpush1.bf16.msra.mxu0 0
        %1333 = vmatprep.subr.bf16.mxu0 0
        %1334 = vmatpush1.bf16.msra.mxu0 0
        %1335 = vmatprep.subr.bf16.mxu0 0
        %1336 = vmatpush1.bf16.msra.mxu0 0
        %1337 = vmatprep.subr.bf16.mxu0 0
        %1338 = vmatpush1.bf16.msra.mxu0 0
        %1339 = vmatprep.subr.bf16.mxu0 0
        %1340 = vmatpush1.bf16.msra.mxu0 0
        %1341 = vmatprep.mubr.bf16.mxu0 0
        %1342 = vmatmul.mubr.bf16.gmra.mrb[0].mxu0 %v1307
        %v1343 = vpop.f32.mrb[0].mxu0
        %v1344 = vadd.f32 %v1209, %v1343
        %v1345 = vpop.f32.mrb[0].mxu0
        %v1346 = vpop.f32.mrb[0].mxu0
        %v1347 = vadd.f32 %v1212, %v1346
        %v1348 = vpop.f32.mrb[0].mxu0
        %1349 = vmatprep.mubr.bf16.mxu0 0
        %1350 = vmatmul.mubr.bf16.gmra.mrb[0].mxu0 %v1158
        %v1351 = vpop.f32.mrb[0].mxu0
        %v1352 = vadd.f32 %v1217, %v1351
        %v1353 = vpop.f32.mrb[0].mxu0
        %v1354 = vpop.f32.mrb[0].mxu0
        %v1355 = vadd.f32 %v1220, %v1354
        %v1356 = vpop.f32.mrb[0].mxu0
        %1357 = vmatprep.mubr.bf16.mxu0 0
        %1358 = vmatmul.mubr.bf16.gmra.mrb[0].mxu0 %v1160
        %v1359 = vpop.f32.mrb[0].mxu0
        %v1360 = vadd.f32 %v1225, %v1359
        %v1361 = vpop.f32.mrb[0].mxu0
        %v1362 = vpop.f32.mrb[0].mxu0
        %v1363 = vadd.f32 %v1228, %v1362
        %v1364 = vpop.f32.mrb[0].mxu0
        %1365 = vmatprep.mubr.bf16.mxu0 0
        %1366 = vmatmul.mubr.bf16.gmra.mrb[0].mxu0 %v1162
        %v1367 = vpop.f32.mrb[0].mxu0
        %v1368 = vadd.f32 %v1233, %v1367
        %v1369 = vpop.f32.mrb[0].mxu0
        %v1370 = vpop.f32.mrb[0].mxu0
        %v1371 = vadd.f32 %v1236, %v1370
        %v1372 = vpop.f32.mrb[0].mxu0
        %1373 = vmatprep.mubr.bf16.mxu0 0
        %1374 = vmatmul.mubr.bf16.gmra.mrb[0].mxu0 %v1164
        %v1375 = vpop.f32.mrb[0].mxu0
        %v1376 = vadd.f32 %v1241, %v1375
        %v1377 = vpop.f32.mrb[0].mxu0
        %v1378 = vpop.f32.mrb[0].mxu0
        %v1379 = vadd.f32 %v1244, %v1378
        %v1380 = vpop.f32.mrb[0].mxu0
        %1381 = vmatprep.mubr.bf16.mxu0 0
        %1382 = vmatmul.mubr.bf16.gmra.mrb[0].mxu0 %v1166
        %v1383 = vpop.f32.mrb[0].mxu0
        %v1384 = vadd.f32 %v1249, %v1383
        %v1385 = vpop.f32.mrb[0].mxu0
        %v1386 = vpop.f32.mrb[0].mxu0
        %v1387 = vadd.f32 %v1252, %v1386
        %v1388 = vpop.f32.mrb[0].mxu0
        %1389 = vmatprep.mubr.bf16.mxu0 0
        %1390 = vmatmul.mubr.bf16.gmra.mrb[0].mxu0 %v1168
        %v1391 = vpop.f32.mrb[0].mxu0
        %v1392 = vadd.f32 %v1257, %v1391
        %v1393 = vpop.f32.mrb[0].mxu0
        %v1394 = vpop.f32.mrb[0].mxu0
        %v1395 = vadd.f32 %v1260, %v1394
        %v1396 = vpop.f32.mrb[0].mxu0
        %1397 = vmatprep.mubr.bf16.mxu0 0
        %1398 = vmatmul.mubr.bf16.gmra.mrb[0].mxu0 %v1170
        %v1399 = vpop.f32.mrb[0].mxu0
        %v1400 = vadd.f32 %v1265, %v1399
        %v1401 = vpop.f32.mrb[0].mxu0
        %v1402 = vpop.f32.mrb[0].mxu0
        %v1403 = vadd.f32 %v1268, %v1402
        %v1404 = vpop.f32.mrb[0].mxu0
        %1405 = vdwg.mxu0
        %s1406 = scalar_lea.vmem %s2, 96
        %v1407 = vld [vmem:[%s1406] sm:$0xf]
        %v1408 = vld [vmem:[%s1406 + $0x4] sm:$0xf]
        %v1409 = vld [vmem:[%s1406 + $0x8] sm:$0xf]
        %v1410 = vld [vmem:[%s1406 + $0xc] sm:$0xf]
        %v1411 = vld [vmem:[%s1406 + $0x10] sm:$0xf]
        %v1412 = vld [vmem:[%s1406 + $0x14] sm:$0xf]
        %v1413 = vld [vmem:[%s1406 + $0x18] sm:$0xf]
        %v1414 = vld [vmem:[%s1406 + $0x1c] sm:$0xf]
        %v1415 = vld [vmem:[%s1406 + $0x20] sm:$0xf]
        %v1416 = vld [vmem:[%s1406 + $0x24] sm:$0xf]
        %v1417 = vld [vmem:[%s1406 + $0x28] sm:$0xf]
        %v1418 = vld [vmem:[%s1406 + $0x2c] sm:$0xf]
        %v1431 = vunpack.c.l.b16 %v1407
        %v1432 = vunpack.c.l.b16 %v1408
        %v1433 = vunpack.c.l.b16 %v1409
        %v1434 = vunpack.c.l.b16 %v1410
        %v1435 = vunpack.c.l.b16 %v1411
        %v1436 = vunpack.c.l.b16 %v1412
        %v1437 = vunpack.c.l.b16 %v1413
        %v1438 = vunpack.c.l.b16 %v1414
        %v1439 = vunpack.c.l.b16 %v1415
        %v1440 = vunpack.c.l.b16 %v1416
        %v1441 = vunpack.c.l.b16 %v1417
        %v1442 = vunpack.c.l.b16 %v1418
        %v1443 = vpack.c.b16 %v1432, %v1431
        %v1444 = vpack.c.b16 %v1434, %v1433
        %v1445 = vpack.c.b16 %v1436, %v1435
        %v1446 = vpack.c.b16 %v1438, %v1437
        %v1447 = vpack.c.b16 %v1440, %v1439
        %v1448 = vpack.c.b16 %v1442, %v1441
        %1455 = vmatprep.subr.bf16.mxu0 0
        %1456 = vmatpush1.bf16.msra.mxu0 %v1443
        %1457 = vmatprep.subr.bf16.mxu0 0
        %1458 = vmatpush1.bf16.msra.mxu0 %v1444
        %1459 = vmatprep.subr.bf16.mxu0 0
        %1460 = vmatpush1.bf16.msra.mxu0 %v1445
        %1461 = vmatprep.subr.bf16.mxu0 0
        %1462 = vmatpush1.bf16.msra.mxu0 %v1446
        %1463 = vmatprep.subr.bf16.mxu0 0
        %1464 = vmatpush1.bf16.msra.mxu0 %v1447
        %1465 = vmatprep.subr.bf16.mxu0 0
        %1466 = vmatpush1.bf16.msra.mxu0 %v1448
        %1467 = vmatprep.subr.bf16.mxu0 0
        %1468 = vmatpush1.bf16.msra.mxu0 0
        %1469 = vmatprep.subr.bf16.mxu0 0
        %1470 = vmatpush1.bf16.msra.mxu0 0
        %1471 = vmatprep.subr.bf16.mxu0 0
        %1472 = vmatpush1.bf16.msra.mxu0 0
        %1473 = vmatprep.subr.bf16.mxu0 0
        %1474 = vmatpush1.bf16.msra.mxu0 0
        %1475 = vmatprep.subr.bf16.mxu0 0
        %1476 = vmatpush1.bf16.msra.mxu0 0
        %1477 = vmatprep.subr.bf16.mxu0 0
        %1478 = vmatpush1.bf16.msra.mxu0 0
        %1479 = vmatprep.subr.bf16.mxu0 0
        %1480 = vmatpush1.bf16.msra.mxu0 0
        %1481 = vmatprep.subr.bf16.mxu0 0
        %1482 = vmatpush1.bf16.msra.mxu0 0
        %1483 = vmatprep.subr.bf16.mxu0 0
        %1484 = vmatpush1.bf16.msra.mxu0 0
        %1485 = vmatprep.subr.bf16.mxu0 0
        %1486 = vmatpush1.bf16.msra.mxu0 0
        %1487 = vmatprep.mubr.bf16.mxu0 0
        %1488 = vmatmul.mubr.bf16.gmra.mrb[0].mxu0 %v1160
        %v1489 = vpop.f32.mrb[0].mxu0
        %v1490 = vadd.f32 0.0, %v1489
        %v1491 = vpop.f32.mrb[0].mxu0
        %v1492 = vpop.f32.mrb[0].mxu0
        %v1493 = vadd.f32 0.0, %v1492
        %v1494 = vpop.f32.mrb[0].mxu0
        %1495 = vmatprep.mubr.bf16.mxu0 0
        %1496 = vmatmul.mubr.bf16.gmra.mrb[0].mxu0 %v1162
        %v1497 = vpop.f32.mrb[0].mxu0
        %v1498 = vadd.f32 0.0, %v1497
        %v1499 = vpop.f32.mrb[0].mxu0
        %v1500 = vpop.f32.mrb[0].mxu0
        %v1501 = vadd.f32 0.0, %v1500
        %v1502 = vpop.f32.mrb[0].mxu0
        %1503 = vmatprep.mubr.bf16.mxu0 0
        %1504 = vmatmul.mubr.bf16.gmra.mrb[0].mxu0 %v1164
        %v1505 = vpop.f32.mrb[0].mxu0
        %v1506 = vadd.f32 0.0, %v1505
        %v1507 = vpop.f32.mrb[0].mxu0
        %v1508 = vpop.f32.mrb[0].mxu0
        %v1509 = vadd.f32 0.0, %v1508
        %v1510 = vpop.f32.mrb[0].mxu0
        %1511 = vmatprep.mubr.bf16.mxu0 0
        %1512 = vmatmul.mubr.bf16.gmra.mrb[0].mxu0 %v1166
        %v1513 = vpop.f32.mrb[0].mxu0
        %v1514 = vadd.f32 0.0, %v1513
        %v1515 = vpop.f32.mrb[0].mxu0
        %v1516 = vpop.f32.mrb[0].mxu0
        %v1517 = vadd.f32 0.0, %v1516
        %v1518 = vpop.f32.mrb[0].mxu0
        %1519 = vmatprep.mubr.bf16.mxu0 0
        %1520 = vmatmul.mubr.bf16.gmra.mrb[0].mxu0 %v1168
        %v1521 = vpop.f32.mrb[0].mxu0
        %v1522 = vadd.f32 0.0, %v1521
        %v1523 = vpop.f32.mrb[0].mxu0
        %v1524 = vpop.f32.mrb[0].mxu0
        %v1525 = vadd.f32 0.0, %v1524
        %v1526 = vpop.f32.mrb[0].mxu0
        %1527 = vmatprep.mubr.bf16.mxu0 0
        %1528 = vmatmul.mubr.bf16.gmra.mrb[0].mxu0 %v1170
        %v1529 = vpop.f32.mrb[0].mxu0
        %v1530 = vadd.f32 0.0, %v1529
        %v1531 = vpop.f32.mrb[0].mxu0
        %v1532 = vpop.f32.mrb[0].mxu0
        %v1533 = vadd.f32 0.0, %v1532
        %v1534 = vpop.f32.mrb[0].mxu0
        %1535 = vmatprep.mubr.bf16.mxu0 0
        %1536 = vmatmul.mubr.bf16.gmra.mrb[0].mxu0 %v1172
        %v1537 = vpop.f32.mrb[0].mxu0
        %v1538 = vadd.f32 0.0, %v1537
        %v1539 = vpop.f32.mrb[0].mxu0
        %v1540 = vpop.f32.mrb[0].mxu0
        %v1541 = vadd.f32 0.0, %v1540
        %v1542 = vpop.f32.mrb[0].mxu0
        %1543 = vmatprep.mubr.bf16.mxu0 0
        %1544 = vmatmul.mubr.bf16.gmra.mrb[0].mxu0 %v1307
        %v1545 = vpop.f32.mrb[0].mxu0
        %v1546 = vadd.f32 0.0, %v1545
        %v1547 = vpop.f32.mrb[0].mxu0
        %v1548 = vpop.f32.mrb[0].mxu0
        %v1549 = vadd.f32 0.0, %v1548
        %v1550 = vpop.f32.mrb[0].mxu0
        %1551 = vdwg.mxu0
        %v1552 = vadd.f32 %v1344, %v1490
        %v1553 = vadd.f32 %v1347, %v1493
        %v1554 = vadd.f32 %v1352, %v1498
        %v1555 = vadd.f32 %v1355, %v1501
        %v1556 = vadd.f32 %v1360, %v1506
        %v1557 = vadd.f32 %v1363, %v1509
        %v1558 = vadd.f32 %v1368, %v1514
        %v1559 = vadd.f32 %v1371, %v1517
        %v1560 = vadd.f32 %v1376, %v1522
        %v1561 = vadd.f32 %v1379, %v1525
        %v1562 = vadd.f32 %v1384, %v1530
        %v1563 = vadd.f32 %v1387, %v1533
        %v1564 = vadd.f32 %v1392, %v1538
        %v1565 = vadd.f32 %v1395, %v1541
        %v1566 = vadd.f32 %v1400, %v1546
        %v1567 = vadd.f32 %v1403, %v1549
        %v1568 = vld [vmem:[%s5 + $0x1] sm:$0x1]
        %v1569 = vlaneseq
        %v1570 = vshrl.u32 %v1569, 7
        %v1571 = vsub.s32 0, %v1570
        %v1572 = vrot.slane %v1568, %v1571
        %v1573 = vadd.f32 %v1552, %v1572
        %v1574 = vadd.f32 %v1553, %v1572
        %v1575 = vadd.f32 %v1554, %v1572
        %v1576 = vadd.f32 %v1555, %v1572
        %v1577 = vadd.f32 %v1556, %v1572
        %v1578 = vadd.f32 %v1557, %v1572
        %v1579 = vadd.f32 %v1558, %v1572
        %v1580 = vadd.f32 %v1559, %v1572
        %v1581 = vadd.f32 %v1560, %v1572
        %v1582 = vadd.f32 %v1561, %v1572
        %v1583 = vadd.f32 %v1562, %v1572
        %v1584 = vadd.f32 %v1563, %v1572
        %v1585 = vadd.f32 %v1564, %v1572
        %v1586 = vadd.f32 %v1565, %v1572
        %v1587 = vadd.f32 %v1566, %v1572
        %v1588 = vadd.f32 %v1567, %v1572
        %s1589 = sld [smem:[#allocation2 + $0x1]]
        %vm1590 = vcmp.ge.f32.partialorder %v1573, 0.0
        %vm1591 = vcmp.ge.f32.partialorder %v1574, 0.0
        %vm1592 = vcmp.ge.f32.partialorder %v1575, 0.0
        %vm1593 = vcmp.ge.f32.partialorder %v1576, 0.0
        %vm1594 = vcmp.ge.f32.partialorder %v1577, 0.0
        %vm1595 = vcmp.ge.f32.partialorder %v1578, 0.0
        %vm1596 = vcmp.ge.f32.partialorder %v1579, 0.0
        %vm1597 = vcmp.ge.f32.partialorder %v1580, 0.0
        %vm1598 = vcmp.ge.f32.partialorder %v1581, 0.0
        %vm1599 = vcmp.ge.f32.partialorder %v1582, 0.0
        %vm1600 = vcmp.ge.f32.partialorder %v1583, 0.0
        %vm1601 = vcmp.ge.f32.partialorder %v1584, 0.0
        %vm1602 = vcmp.ge.f32.partialorder %v1585, 0.0
        %vm1603 = vcmp.ge.f32.partialorder %v1586, 0.0
        %vm1604 = vcmp.ge.f32.partialorder %v1587, 0.0
        %vm1605 = vcmp.ge.f32.partialorder %v1588, 0.0
        %v1606 = vstv %s1589
        %v1607 = vmul.f32 %v1606, %v1573
        %v1608 = vmul.f32 %v1606, %v1574
        %v1609 = vmul.f32 %v1606, %v1575
        %v1610 = vmul.f32 %v1606, %v1576
        %v1611 = vmul.f32 %v1606, %v1577
        %v1612 = vmul.f32 %v1606, %v1578
        %v1613 = vmul.f32 %v1606, %v1579
        %v1614 = vmul.f32 %v1606, %v1580
        %v1615 = vmul.f32 %v1606, %v1581
        %v1616 = vmul.f32 %v1606, %v1582
        %v1617 = vmul.f32 %v1606, %v1583
        %v1618 = vmul.f32 %v1606, %v1584
        %v1619 = vmul.f32 %v1606, %v1585
        %v1620 = vmul.f32 %v1606, %v1586
        %v1621 = vmul.f32 %v1606, %v1587
        %v1622 = vmul.f32 %v1606, %v1588
        %v1623 = vsel %vm1590, %v1573, %v1607
        %v1624 = vsel %vm1591, %v1574, %v1608
        %v1625 = vsel %vm1592, %v1575, %v1609
        %v1626 = vsel %vm1593, %v1576, %v1610
        %v1627 = vsel %vm1594, %v1577, %v1611
        %v1628 = vsel %vm1595, %v1578, %v1612
        %v1629 = vsel %vm1596, %v1579, %v1613
        %v1630 = vsel %vm1597, %v1580, %v1614
        %v1631 = vsel %vm1598, %v1581, %v1615
        %v1632 = vsel %vm1599, %v1582, %v1616
        %v1633 = vsel %vm1600, %v1583, %v1617
        %v1634 = vsel %vm1601, %v1584, %v1618
        %v1635 = vsel %vm1602, %v1585, %v1619
        %v1636 = vsel %vm1603, %v1586, %v1620
        %v1637 = vsel %vm1604, %v1587, %v1621
        %v1638 = vsel %vm1605, %v1588, %v1622
        %v1639 = vmax.f32 %v1623, %v1625
        %v1640 = vmax.f32 %v1624, %v1626
        %v1641 = vmax.f32 %v1627, %v1629
        %v1642 = vmax.f32 %v1628, %v1630
        %v1643 = vmax.f32 %v1631, %v1633
        %v1644 = vmax.f32 %v1632, %v1634
        %v1645 = vmax.f32 %v1635, %v1637
        %v1646 = vmax.f32 %v1636, %v1638
        %v1647 = vpack.c.bf16 %v1640, %v1639
        %v1648 = vpack.c.bf16 %v1642, %v1641
        %v1649 = vpack.c.bf16 %v1644, %v1643
        %v1650 = vpack.c.bf16 %v1646, %v1645
        %v1652 = vshrl.u32 %v1647, 16
        %v1654 = vrot.slane %v1652, 7
        %v1655 = vshll.u32 %v1647, 16
        %v1657 = vor.u32 %v1654, %v1655
        %v1659 = vshrl.u32 %v1648, 16
        %v1661 = vrot.slane %v1659, 7
        %v1662 = vshll.u32 %v1648, 16
        %v1664 = vor.u32 %v1661, %v1662
        %v1666 = vshrl.u32 %v1649, 16
        %v1668 = vrot.slane %v1666, 7
        %v1669 = vshll.u32 %v1649, 16
        %v1671 = vor.u32 %v1668, %v1669
        %v1678 = vsel %vm839, 0, %v1657
        %v1679 = vsel %vm839, 0, %v1664
        %v1680 = vsel %vm839, 0, %v1671
        %v1681 = vsel %vm839, %v1654, 0
        %v1682 = vsel %vm839, %v1661, 0
        %v1683 = vsel %vm839, %v1668, 0
        %v1685 = vshrl.u32 %v1678, 16
        %v1687 = vshll.u32 %v1678, 16
        %v1689 = vrot.slane %v1687, 1
        %v1690 = vor.u32 %v1685, %v1689
        %v1692 = vshll.u32 %v1681, 16
        %v1694 = vrot.slane %v1692, 1
        %v1695 = vsel %vm856, %v1690, %v1694
        %v1697 = vshrl.u32 %v1679, 16
        %v1699 = vshll.u32 %v1679, 16
        %v1701 = vrot.slane %v1699, 1
        %v1702 = vor.u32 %v1697, %v1701
        %v1704 = vshll.u32 %v1682, 16
        %v1706 = vrot.slane %v1704, 1
        %v1707 = vsel %vm856, %v1702, %v1706
        %v1709 = vshrl.u32 %v1680, 16
        %v1711 = vshll.u32 %v1680, 16
        %v1713 = vrot.slane %v1711, 1
        %v1714 = vor.u32 %v1709, %v1713
        %v1716 = vshll.u32 %v1683, 16
        %v1718 = vrot.slane %v1716, 1
        %v1719 = vsel %vm856, %v1714, %v1718
        %1720 = vrot.lane.b32.xlu0 %v1695, 32
        %v1721 = vpop.permute.xlu0 %1720
        %1722 = vrot.lane.b32.xlu0 %v1707, 32
        %v1723 = vpop.permute.xlu0 %1722
        %1724 = vrot.lane.b32.xlu0 %v1719, 32
        %v1725 = vpop.permute.xlu0 %1724
        %v1732 = vrot.slane %v1678, 1
        %v1733 = vrot.slane %v1681, 1
        %v1734 = vsel %vm985, %v1732, %v1733
        %v1735 = vrot.slane %v1679, 1
        %v1736 = vrot.slane %v1682, 1
        %v1737 = vsel %vm985, %v1735, %v1736
        %v1738 = vrot.slane %v1680, 1
        %v1739 = vrot.slane %v1683, 1
        %v1740 = vsel %vm985, %v1738, %v1739
        %1741 = vrot.lane.b32.xlu0 %v1734, 64
        %v1742 = vpop.permute.xlu0 %1741
        %1743 = vrot.lane.b32.xlu0 %v1737, 64
        %v1744 = vpop.permute.xlu0 %1743
        %1745 = vrot.lane.b32.xlu0 %v1740, 64
        %v1746 = vpop.permute.xlu0 %1745
        %v1748 = vsel %vm1026, %v1678, %v1721
        %v1750 = vsel %vm1026, %v1679, %v1723
        %v1752 = vsel %vm1026, %v1680, %v1725
        %v1754 = vsel %vm1043, %v1748, %v1742
        %v1756 = vsel %vm1043, %v1750, %v1744
        %v1758 = vsel %vm1043, %v1752, %v1746
        %v1759 = vld [vmem:[%s3] sm:$0xf]
        %v1760 = vld [vmem:[%s3 + $0x4] sm:$0xf]
        %v1761 = vld [vmem:[%s3 + $0x8] sm:$0xf]
        %v1762 = vld [vmem:[%s3 + $0xc] sm:$0xf]
        %v1763 = vld [vmem:[%s3 + $0x10] sm:$0xf]
        %v1764 = vld [vmem:[%s3 + $0x14] sm:$0xf]
        %v1765 = vld [vmem:[%s3 + $0x18] sm:$0xf]
        %v1766 = vld [vmem:[%s3 + $0x1c] sm:$0xf]
        %v1767 = vld [vmem:[%s3 + $0x20] sm:$0xf]
        %v1768 = vld [vmem:[%s3 + $0x24] sm:$0xf]
        %v1769 = vld [vmem:[%s3 + $0x28] sm:$0xf]
        %v1770 = vld [vmem:[%s3 + $0x2c] sm:$0xf]
        %v1772 = vshrl.u32 %v1650, 16
        %v1774 = vrot.slane %v1772, 7
        %v1775 = vshll.u32 %v1650, 16
        %v1777 = vor.u32 %v1774, %v1775
        %v1780 = vsel %vm839, 0, %v1777
        %v1781 = vsel %vm839, %v1774, 0
        %v1783 = vshrl.u32 %v1780, 16
        %v1785 = vshll.u32 %v1780, 16
        %v1787 = vrot.slane %v1785, 1
        %v1788 = vor.u32 %v1783, %v1787
        %v1790 = vshll.u32 %v1781, 16
        %v1792 = vrot.slane %v1790, 1
        %v1793 = vsel %vm856, %v1788, %v1792
        %1794 = vrot.lane.b32.xlu0 %v1793, 32
        %v1795 = vpop.permute.xlu0 %1794
        %v1798 = vrot.slane %v1780, 1
        %v1799 = vrot.slane %v1781, 1
        %v1800 = vsel %vm985, %v1798, %v1799
        %1801 = vrot.lane.b32.xlu0 %v1800, 64
        %v1802 = vpop.permute.xlu0 %1801
        %v1804 = vsel %vm1026, %v1780, %v1795
        %v1806 = vsel %vm1043, %v1804, %v1802
        %s1807 = scalar_lea.vmem %s3, 48
        %v1808 = vld [vmem:[%s1807] sm:$0xf]
        %v1809 = vld [vmem:[%s1807 + $0x4] sm:$0xf]
        %v1810 = vld [vmem:[%s1807 + $0x8] sm:$0xf]
        %v1811 = vld [vmem:[%s1807 + $0xc] sm:$0xf]
        %v1812 = vld [vmem:[%s1807 + $0x10] sm:$0xf]
        %v1813 = vld [vmem:[%s1807 + $0x14] sm:$0xf]
        %v1814 = vld [vmem:[%s1807 + $0x18] sm:$0xf]
        %v1815 = vld [vmem:[%s1807 + $0x1c] sm:$0xf]
        %v1816 = vld [vmem:[%s1807 + $0x20] sm:$0xf]
        %v1817 = vld [vmem:[%s1807 + $0x24] sm:$0xf]
        %v1818 = vld [vmem:[%s1807 + $0x28] sm:$0xf]
        %v1819 = vld [vmem:[%s1807 + $0x2c] sm:$0xf]
        %v1832 = vunpack.c.l.b16 %v1808
        %v1833 = vunpack.c.l.b16 %v1809
        %v1834 = vunpack.c.l.b16 %v1810
        %v1835 = vunpack.c.l.b16 %v1811
        %v1836 = vunpack.c.l.b16 %v1812
        %v1837 = vunpack.c.l.b16 %v1813
        %v1838 = vunpack.c.l.b16 %v1814
        %v1839 = vunpack.c.l.b16 %v1815
        %v1840 = vunpack.c.l.b16 %v1816
        %v1841 = vunpack.c.l.b16 %v1817
        %v1842 = vunpack.c.l.b16 %v1818
        %v1843 = vunpack.c.l.b16 %v1819
        %v1844 = vpack.c.b16 %v1833, %v1832
        %v1845 = vpack.c.b16 %v1835, %v1834
        %v1846 = vpack.c.b16 %v1837, %v1836
        %v1847 = vpack.c.b16 %v1839, %v1838
        %v1848 = vpack.c.b16 %v1841, %v1840
        %v1849 = vpack.c.b16 %v1843, %v1842
        %v1856 = vsel %vm1157, %v1754, 0
        %v1858 = vsel %vm1157, %v1756, 0
        %v1860 = vsel %vm1157, %v1758, 0
        %v1862 = vsel %vm1157, %v1806, 0
        %1864 = vmatprep.subr.bf16.mxu0 0
        %1865 = vmatpush1.bf16.msra.mxu0 %v1844
        %1866 = vmatprep.subr.bf16.mxu0 0
        %1867 = vmatpush1.bf16.msra.mxu0 %v1845
        %1868 = vmatprep.subr.bf16.mxu0 0
        %1869 = vmatpush1.bf16.msra.mxu0 %v1846
        %1870 = vmatprep.subr.bf16.mxu0 0
        %1871 = vmatpush1.bf16.msra.mxu0 %v1847
        %1872 = vmatprep.subr.bf16.mxu0 0
        %1873 = vmatpush1.bf16.msra.mxu0 %v1848
        %1874 = vmatprep.subr.bf16.mxu0 0
        %1875 = vmatpush1.bf16.msra.mxu0 %v1849
        %1876 = vmatprep.subr.bf16.mxu0 0
        %1877 = vmatpush1.bf16.msra.mxu0 0
        %1878 = vmatprep.subr.bf16.mxu0 0
        %1879 = vmatpush1.bf16.msra.mxu0 0
        %1880 = vmatprep.subr.bf16.mxu0 0
        %1881 = vmatpush1.bf16.msra.mxu0 0
        %1882 = vmatprep.subr.bf16.mxu0 0
        %1883 = vmatpush1.bf16.msra.mxu0 0
        %1884 = vmatprep.subr.bf16.mxu0 0
        %1885 = vmatpush1.bf16.msra.mxu0 0
        %1886 = vmatprep.subr.bf16.mxu0 0
        %1887 = vmatpush1.bf16.msra.mxu0 0
        %1888 = vmatprep.subr.bf16.mxu0 0
        %1889 = vmatpush1.bf16.msra.mxu0 0
        %1890 = vmatprep.subr.bf16.mxu0 0
        %1891 = vmatpush1.bf16.msra.mxu0 0
        %1892 = vmatprep.subr.bf16.mxu0 0
        %1893 = vmatpush1.bf16.msra.mxu0 0
        %1894 = vmatprep.subr.bf16.mxu0 0
        %1895 = vmatpush1.bf16.msra.mxu0 0
        %1896 = vmatprep.mubr.bf16.mxu0 0
        %1897 = vmatmul.mubr.bf16.gmra.mrb[0].mxu0 %v1856
        %v1898 = vpop.f32.mrb[0].mxu0
        %v1899 = vadd.f32 0.0, %v1898
        %v1900 = vpop.f32.mrb[0].mxu0
        %v1901 = vpop.f32.mrb[0].mxu0
        %v1902 = vadd.f32 0.0, %v1901
        %v1903 = vpop.f32.mrb[0].mxu0
        %1904 = vmatprep.mubr.bf16.mxu0 0
        %1905 = vmatmul.mubr.bf16.gmra.mrb[0].mxu0 %v1858
        %v1906 = vpop.f32.mrb[0].mxu0
        %v1907 = vadd.f32 0.0, %v1906
        %v1908 = vpop.f32.mrb[0].mxu0
        %v1909 = vpop.f32.mrb[0].mxu0
        %v1910 = vadd.f32 0.0, %v1909
        %v1911 = vpop.f32.mrb[0].mxu0
        %1912 = vmatprep.mubr.bf16.mxu0 0
        %1913 = vmatmul.mubr.bf16.gmra.mrb[0].mxu0 %v1860
        %v1914 = vpop.f32.mrb[0].mxu0
        %v1915 = vadd.f32 0.0, %v1914
        %v1916 = vpop.f32.mrb[0].mxu0
        %v1917 = vpop.f32.mrb[0].mxu0
        %v1918 = vadd.f32 0.0, %v1917
        %v1919 = vpop.f32.mrb[0].mxu0
        %1920 = vmatprep.mubr.bf16.mxu0 0
        %1921 = vmatmul.mubr.bf16.gmra.mrb[0].mxu0 %v1862
        %v1922 = vpop.f32.mrb[0].mxu0
        %v1923 = vadd.f32 0.0, %v1922
        %v1924 = vpop.f32.mrb[0].mxu0
        %v1925 = vpop.f32.mrb[0].mxu0
        %v1926 = vadd.f32 0.0, %v1925
        %v1927 = vpop.f32.mrb[0].mxu0
        %1928 = vdwg.mxu0
        %v1941 = vunpack.c.l.b16 %v1759
        %v1942 = vunpack.c.l.b16 %v1760
        %v1943 = vunpack.c.l.b16 %v1761
        %v1944 = vunpack.c.l.b16 %v1762
        %v1945 = vunpack.c.l.b16 %v1763
        %v1946 = vunpack.c.l.b16 %v1764
        %v1947 = vunpack.c.l.b16 %v1765
        %v1948 = vunpack.c.l.b16 %v1766
        %v1949 = vunpack.c.l.b16 %v1767
        %v1950 = vunpack.c.l.b16 %v1768
        %v1951 = vunpack.c.l.b16 %v1769
        %v1952 = vunpack.c.l.b16 %v1770
        %v1953 = vpack.c.b16 %v1942, %v1941
        %v1954 = vpack.c.b16 %v1944, %v1943
        %v1955 = vpack.c.b16 %v1946, %v1945
        %v1956 = vpack.c.b16 %v1948, %v1947
        %v1957 = vpack.c.b16 %v1950, %v1949
        %v1958 = vpack.c.b16 %v1952, %v1951
        %1965 = vmatprep.subr.bf16.mxu0 0
        %1966 = vmatpush1.bf16.msra.mxu0 %v1953
        %1967 = vmatprep.subr.bf16.mxu0 0
        %1968 = vmatpush1.bf16.msra.mxu0 %v1954
        %1969 = vmatprep.subr.bf16.mxu0 0
        %1970 = vmatpush1.bf16.msra.mxu0 %v1955
        %1971 = vmatprep.subr.bf16.mxu0 0
        %1972 = vmatpush1.bf16.msra.mxu0 %v1956
        %1973 = vmatprep.subr.bf16.mxu0 0
        %1974 = vmatpush1.bf16.msra.mxu0 %v1957
        %1975 = vmatprep.subr.bf16.mxu0 0
        %1976 = vmatpush1.bf16.msra.mxu0 %v1958
        %1977 = vmatprep.subr.bf16.mxu0 0
        %1978 = vmatpush1.bf16.msra.mxu0 0
        %1979 = vmatprep.subr.bf16.mxu0 0
        %1980 = vmatpush1.bf16.msra.mxu0 0
        %1981 = vmatprep.subr.bf16.mxu0 0
        %1982 = vmatpush1.bf16.msra.mxu0 0
        %1983 = vmatprep.subr.bf16.mxu0 0
        %1984 = vmatpush1.bf16.msra.mxu0 0
        %1985 = vmatprep.subr.bf16.mxu0 0
        %1986 = vmatpush1.bf16.msra.mxu0 0
        %1987 = vmatprep.subr.bf16.mxu0 0
        %1988 = vmatpush1.bf16.msra.mxu0 0
        %1989 = vmatprep.subr.bf16.mxu0 0
        %1990 = vmatpush1.bf16.msra.mxu0 0
        %1991 = vmatprep.subr.bf16.mxu0 0
        %1992 = vmatpush1.bf16.msra.mxu0 0
        %1993 = vmatprep.subr.bf16.mxu0 0
        %1994 = vmatpush1.bf16.msra.mxu0 0
        %1995 = vmatprep.subr.bf16.mxu0 0
        %1996 = vmatpush1.bf16.msra.mxu0 0
        %1997 = vmatprep.mubr.bf16.mxu0 0
        %1998 = vmatmul.mubr.bf16.gmra.mrb[0].mxu0 %v1307
        %v1999 = vpop.f32.mrb[0].mxu0
        %v2000 = vadd.f32 %v1899, %v1999
        %v2001 = vpop.f32.mrb[0].mxu0
        %v2002 = vpop.f32.mrb[0].mxu0
        %v2003 = vadd.f32 %v1902, %v2002
        %v2004 = vpop.f32.mrb[0].mxu0
        %2005 = vmatprep.mubr.bf16.mxu0 0
        %2006 = vmatmul.mubr.bf16.gmra.mrb[0].mxu0 %v1856
        %v2007 = vpop.f32.mrb[0].mxu0
        %v2008 = vadd.f32 %v1907, %v2007
        %v2009 = vpop.f32.mrb[0].mxu0
        %v2010 = vpop.f32.mrb[0].mxu0
        %v2011 = vadd.f32 %v1910, %v2010
        %v2012 = vpop.f32.mrb[0].mxu0
        %2013 = vmatprep.mubr.bf16.mxu0 0
        %2014 = vmatmul.mubr.bf16.gmra.mrb[0].mxu0 %v1858
        %v2015 = vpop.f32.mrb[0].mxu0
        %v2016 = vadd.f32 %v1915, %v2015
        %v2017 = vpop.f32.mrb[0].mxu0
        %v2018 = vpop.f32.mrb[0].mxu0
        %v2019 = vadd.f32 %v1918, %v2018
        %v2020 = vpop.f32.mrb[0].mxu0
        %2021 = vmatprep.mubr.bf16.mxu0 0
        %2022 = vmatmul.mubr.bf16.gmra.mrb[0].mxu0 %v1860
        %v2023 = vpop.f32.mrb[0].mxu0
        %v2024 = vadd.f32 %v1923, %v2023
        %v2025 = vpop.f32.mrb[0].mxu0
        %v2026 = vpop.f32.mrb[0].mxu0
        %v2027 = vadd.f32 %v1926, %v2026
        %v2028 = vpop.f32.mrb[0].mxu0
        %2029 = vdwg.mxu0
        %s2030 = scalar_lea.vmem %s3, 96
        %v2031 = vld [vmem:[%s2030] sm:$0xf]
        %v2032 = vld [vmem:[%s2030 + $0x4] sm:$0xf]
        %v2033 = vld [vmem:[%s2030 + $0x8] sm:$0xf]
        %v2034 = vld [vmem:[%s2030 + $0xc] sm:$0xf]
        %v2035 = vld [vmem:[%s2030 + $0x10] sm:$0xf]
        %v2036 = vld [vmem:[%s2030 + $0x14] sm:$0xf]
        %v2037 = vld [vmem:[%s2030 + $0x18] sm:$0xf]
        %v2038 = vld [vmem:[%s2030 + $0x1c] sm:$0xf]
        %v2039 = vld [vmem:[%s2030 + $0x20] sm:$0xf]
        %v2040 = vld [vmem:[%s2030 + $0x24] sm:$0xf]
        %v2041 = vld [vmem:[%s2030 + $0x28] sm:$0xf]
        %v2042 = vld [vmem:[%s2030 + $0x2c] sm:$0xf]
        %v2055 = vunpack.c.l.b16 %v2031
        %v2056 = vunpack.c.l.b16 %v2032
        %v2057 = vunpack.c.l.b16 %v2033
        %v2058 = vunpack.c.l.b16 %v2034
        %v2059 = vunpack.c.l.b16 %v2035
        %v2060 = vunpack.c.l.b16 %v2036
        %v2061 = vunpack.c.l.b16 %v2037
        %v2062 = vunpack.c.l.b16 %v2038
        %v2063 = vunpack.c.l.b16 %v2039
        %v2064 = vunpack.c.l.b16 %v2040
        %v2065 = vunpack.c.l.b16 %v2041
        %v2066 = vunpack.c.l.b16 %v2042
        %v2067 = vpack.c.b16 %v2056, %v2055
        %v2068 = vpack.c.b16 %v2058, %v2057
        %v2069 = vpack.c.b16 %v2060, %v2059
        %v2070 = vpack.c.b16 %v2062, %v2061
        %v2071 = vpack.c.b16 %v2064, %v2063
        %v2072 = vpack.c.b16 %v2066, %v2065
        %2079 = vmatprep.subr.bf16.mxu0 0
        %2080 = vmatpush1.bf16.msra.mxu0 %v2067
        %2081 = vmatprep.subr.bf16.mxu0 0
        %2082 = vmatpush1.bf16.msra.mxu0 %v2068
        %2083 = vmatprep.subr.bf16.mxu0 0
        %2084 = vmatpush1.bf16.msra.mxu0 %v2069
        %2085 = vmatprep.subr.bf16.mxu0 0
        %2086 = vmatpush1.bf16.msra.mxu0 %v2070
        %2087 = vmatprep.subr.bf16.mxu0 0
        %2088 = vmatpush1.bf16.msra.mxu0 %v2071
        %2089 = vmatprep.subr.bf16.mxu0 0
        %2090 = vmatpush1.bf16.msra.mxu0 %v2072
        %2091 = vmatprep.subr.bf16.mxu0 0
        %2092 = vmatpush1.bf16.msra.mxu0 0
        %2093 = vmatprep.subr.bf16.mxu0 0
        %2094 = vmatpush1.bf16.msra.mxu0 0
        %2095 = vmatprep.subr.bf16.mxu0 0
        %2096 = vmatpush1.bf16.msra.mxu0 0
        %2097 = vmatprep.subr.bf16.mxu0 0
        %2098 = vmatpush1.bf16.msra.mxu0 0
        %2099 = vmatprep.subr.bf16.mxu0 0
        %2100 = vmatpush1.bf16.msra.mxu0 0
        %2101 = vmatprep.subr.bf16.mxu0 0
        %2102 = vmatpush1.bf16.msra.mxu0 0
        %2103 = vmatprep.subr.bf16.mxu0 0
        %2104 = vmatpush1.bf16.msra.mxu0 0
        %2105 = vmatprep.subr.bf16.mxu0 0
        %2106 = vmatpush1.bf16.msra.mxu0 0
        %2107 = vmatprep.subr.bf16.mxu0 0
        %2108 = vmatpush1.bf16.msra.mxu0 0
        %2109 = vmatprep.subr.bf16.mxu0 0
        %2110 = vmatpush1.bf16.msra.mxu0 0
        %2111 = vmatprep.mubr.bf16.mxu0 0
        %2112 = vmatmul.mubr.bf16.gmra.mrb[0].mxu0 %v1858
        %v2113 = vpop.f32.mrb[0].mxu0
        %v2114 = vadd.f32 0.0, %v2113
        %v2115 = vpop.f32.mrb[0].mxu0
        %v2116 = vpop.f32.mrb[0].mxu0
        %v2117 = vadd.f32 0.0, %v2116
        %v2118 = vpop.f32.mrb[0].mxu0
        %2119 = vmatprep.mubr.bf16.mxu0 0
        %2120 = vmatmul.mubr.bf16.gmra.mrb[0].mxu0 %v1860
        %v2121 = vpop.f32.mrb[0].mxu0
        %v2122 = vadd.f32 0.0, %v2121
        %v2123 = vpop.f32.mrb[0].mxu0
        %v2124 = vpop.f32.mrb[0].mxu0
        %v2125 = vadd.f32 0.0, %v2124
        %v2126 = vpop.f32.mrb[0].mxu0
        %2127 = vmatprep.mubr.bf16.mxu0 0
        %2128 = vmatmul.mubr.bf16.gmra.mrb[0].mxu0 %v1862
        %v2129 = vpop.f32.mrb[0].mxu0
        %v2130 = vadd.f32 0.0, %v2129
        %v2131 = vpop.f32.mrb[0].mxu0
        %v2132 = vpop.f32.mrb[0].mxu0
        %v2133 = vadd.f32 0.0, %v2132
        %v2134 = vpop.f32.mrb[0].mxu0
        %2135 = vmatprep.mubr.bf16.mxu0 0
        %2136 = vmatmul.mubr.bf16.gmra.mrb[0].mxu0 %v1307
        %v2137 = vpop.f32.mrb[0].mxu0
        %v2138 = vadd.f32 0.0, %v2137
        %v2139 = vpop.f32.mrb[0].mxu0
        %v2140 = vpop.f32.mrb[0].mxu0
        %v2141 = vadd.f32 0.0, %v2140
        %v2142 = vpop.f32.mrb[0].mxu0
        %2143 = vdwg.mxu0
        %v2144 = vadd.f32 %v2000, %v2114
        %v2145 = vadd.f32 %v2003, %v2117
        %v2146 = vadd.f32 %v2008, %v2122
        %v2147 = vadd.f32 %v2011, %v2125
        %v2148 = vadd.f32 %v2016, %v2130
        %v2149 = vadd.f32 %v2019, %v2133
        %v2150 = vadd.f32 %v2024, %v2138
        %v2151 = vadd.f32 %v2027, %v2141
        %v2152 = vld [vmem:[%s5 + $0x2] sm:$0x1]
        %v2153 = vlaneseq
        %v2154 = vshrl.u32 %v2153, 7
        %v2155 = vsub.s32 0, %v2154
        %v2156 = vrot.slane %v2152, %v2155
        %v2157 = vadd.f32 %v2144, %v2156
        %v2158 = vadd.f32 %v2145, %v2156
        %v2159 = vadd.f32 %v2146, %v2156
        %v2160 = vadd.f32 %v2147, %v2156
        %v2161 = vadd.f32 %v2148, %v2156
        %v2162 = vadd.f32 %v2149, %v2156
        %v2163 = vadd.f32 %v2150, %v2156
        %v2164 = vadd.f32 %v2151, %v2156
        %s2165 = sld [smem:[#allocation2 + $0x2]]
        %vm2166 = vcmp.ge.f32.partialorder %v2157, 0.0
        %vm2167 = vcmp.ge.f32.partialorder %v2158, 0.0
        %vm2168 = vcmp.ge.f32.partialorder %v2159, 0.0
        %vm2169 = vcmp.ge.f32.partialorder %v2160, 0.0
        %vm2170 = vcmp.ge.f32.partialorder %v2161, 0.0
        %vm2171 = vcmp.ge.f32.partialorder %v2162, 0.0
        %vm2172 = vcmp.ge.f32.partialorder %v2163, 0.0
        %vm2173 = vcmp.ge.f32.partialorder %v2164, 0.0
        %v2174 = vstv %s2165
        %v2175 = vmul.f32 %v2174, %v2157
        %v2176 = vmul.f32 %v2174, %v2158
        %v2177 = vmul.f32 %v2174, %v2159
        %v2178 = vmul.f32 %v2174, %v2160
        %v2179 = vmul.f32 %v2174, %v2161
        %v2180 = vmul.f32 %v2174, %v2162
        %v2181 = vmul.f32 %v2174, %v2163
        %v2182 = vmul.f32 %v2174, %v2164
        %v2183 = vsel %vm2166, %v2157, %v2175
        %v2184 = vsel %vm2167, %v2158, %v2176
        %v2185 = vsel %vm2168, %v2159, %v2177
        %v2186 = vsel %vm2169, %v2160, %v2178
        %v2187 = vsel %vm2170, %v2161, %v2179
        %v2188 = vsel %vm2171, %v2162, %v2180
        %v2189 = vsel %vm2172, %v2163, %v2181
        %v2190 = vsel %vm2173, %v2164, %v2182
        %v2191 = vmax.f32 %v2183, %v2185
        %v2192 = vmax.f32 %v2184, %v2186
        %v2193 = vmax.f32 %v2187, %v2189
        %v2194 = vmax.f32 %v2188, %v2190
        %v2195 = vpack.c.bf16 %v2192, %v2191
        %v2196 = vpack.c.bf16 %v2194, %v2193
        %v2198 = vshrl.u32 %v2195, 16
        %v2200 = vrot.slane %v2198, 7
        %v2201 = vshll.u32 %v2195, 16
        %v2203 = vor.u32 %v2200, %v2201
        %v2206 = vsel %vm839, 0, %v2203
        %v2207 = vsel %vm839, %v2200, 0
        %v2209 = vshrl.u32 %v2206, 16
        %v2211 = vshll.u32 %v2206, 16
        %v2213 = vrot.slane %v2211, 1
        %v2214 = vor.u32 %v2209, %v2213
        %v2216 = vshll.u32 %v2207, 16
        %v2218 = vrot.slane %v2216, 1
        %v2219 = vsel %vm856, %v2214, %v2218
        %2220 = vrot.lane.b32.xlu0 %v2219, 32
        %v2221 = vpop.permute.xlu0 %2220
        %v2224 = vrot.slane %v2206, 1
        %v2225 = vrot.slane %v2207, 1
        %v2226 = vsel %vm985, %v2224, %v2225
        %2227 = vrot.lane.b32.xlu0 %v2226, 64
        %v2228 = vpop.permute.xlu0 %2227
        %v2230 = vsel %vm1026, %v2206, %v2221
        %v2232 = vsel %vm1043, %v2230, %v2228
        %v2233 = vld [vmem:[%s4] sm:$0xf]
        %v2234 = vld [vmem:[%s4 + $0x4] sm:$0xf]
        %v2235 = vld [vmem:[%s4 + $0x8] sm:$0xf]
        %v2236 = vld [vmem:[%s4 + $0xc] sm:$0xf]
        %v2237 = vld [vmem:[%s4 + $0x10] sm:$0xf]
        %v2238 = vld [vmem:[%s4 + $0x14] sm:$0xf]
        %v2239 = vld [vmem:[%s4 + $0x18] sm:$0xf]
        %v2240 = vld [vmem:[%s4 + $0x1c] sm:$0xf]
        %v2241 = vld [vmem:[%s4 + $0x20] sm:$0xf]
        %v2242 = vld [vmem:[%s4 + $0x24] sm:$0xf]
        %v2243 = vld [vmem:[%s4 + $0x28] sm:$0xf]
        %v2244 = vld [vmem:[%s4 + $0x2c] sm:$0xf]
        %v2246 = vshrl.u32 %v2196, 16
        %v2248 = vrot.slane %v2246, 7
        %v2249 = vshll.u32 %v2196, 16
        %v2251 = vor.u32 %v2248, %v2249
        %v2254 = vsel %vm839, 0, %v2251
        %v2255 = vsel %vm839, %v2248, 0
        %v2257 = vshrl.u32 %v2254, 16
        %v2259 = vshll.u32 %v2254, 16
        %v2261 = vrot.slane %v2259, 1
        %v2262 = vor.u32 %v2257, %v2261
        %v2264 = vshll.u32 %v2255, 16
        %v2266 = vrot.slane %v2264, 1
        %v2267 = vsel %vm856, %v2262, %v2266
        %2268 = vrot.lane.b32.xlu0 %v2267, 32
        %v2269 = vpop.permute.xlu0 %2268
        %v2272 = vrot.slane %v2254, 1
        %v2273 = vrot.slane %v2255, 1
        %v2274 = vsel %vm985, %v2272, %v2273
        %2275 = vrot.lane.b32.xlu0 %v2274, 64
        %v2276 = vpop.permute.xlu0 %2275
        %v2278 = vsel %vm1026, %v2254, %v2269
        %v2280 = vsel %vm1043, %v2278, %v2276
        %s2281 = scalar_lea.vmem %s4, 48
        %v2282 = vld [vmem:[%s2281] sm:$0xf]
        %v2283 = vld [vmem:[%s2281 + $0x4] sm:$0xf]
        %v2284 = vld [vmem:[%s2281 + $0x8] sm:$0xf]
        %v2285 = vld [vmem:[%s2281 + $0xc] sm:$0xf]
        %v2286 = vld [vmem:[%s2281 + $0x10] sm:$0xf]
        %v2287 = vld [vmem:[%s2281 + $0x14] sm:$0xf]
        %v2288 = vld [vmem:[%s2281 + $0x18] sm:$0xf]
        %v2289 = vld [vmem:[%s2281 + $0x1c] sm:$0xf]
        %v2290 = vld [vmem:[%s2281 + $0x20] sm:$0xf]
        %v2291 = vld [vmem:[%s2281 + $0x24] sm:$0xf]
        %v2292 = vld [vmem:[%s2281 + $0x28] sm:$0xf]
        %v2293 = vld [vmem:[%s2281 + $0x2c] sm:$0xf]
        %v2306 = vunpack.c.l.b16 %v2282
        %v2307 = vunpack.c.l.b16 %v2283
        %v2308 = vunpack.c.l.b16 %v2284
        %v2309 = vunpack.c.l.b16 %v2285
        %v2310 = vunpack.c.l.b16 %v2286
        %v2311 = vunpack.c.l.b16 %v2287
        %v2312 = vunpack.c.l.b16 %v2288
        %v2313 = vunpack.c.l.b16 %v2289
        %v2314 = vunpack.c.l.b16 %v2290
        %v2315 = vunpack.c.l.b16 %v2291
        %v2316 = vunpack.c.l.b16 %v2292
        %v2317 = vunpack.c.l.b16 %v2293
        %v2318 = vpack.c.b16 %v2307, %v2306
        %v2319 = vpack.c.b16 %v2309, %v2308
        %v2320 = vpack.c.b16 %v2311, %v2310
        %v2321 = vpack.c.b16 %v2313, %v2312
        %v2322 = vpack.c.b16 %v2315, %v2314
        %v2323 = vpack.c.b16 %v2317, %v2316
        %v2330 = vsel %vm1157, %v2232, 0
        %v2332 = vsel %vm1157, %v2280, 0
        %2334 = vmatprep.subr.bf16.mxu0 0
        %2335 = vmatpush1.bf16.msra.mxu0 %v2318
        %2336 = vmatprep.subr.bf16.mxu0 0
        %2337 = vmatpush1.bf16.msra.mxu0 %v2319
        %2338 = vmatprep.subr.bf16.mxu0 0
        %2339 = vmatpush1.bf16.msra.mxu0 %v2320
        %2340 = vmatprep.subr.bf16.mxu0 0
        %2341 = vmatpush1.bf16.msra.mxu0 %v2321
        %2342 = vmatprep.subr.bf16.mxu0 0
        %2343 = vmatpush1.bf16.msra.mxu0 %v2322
        %2344 = vmatprep.subr.bf16.mxu0 0
        %2345 = vmatpush1.bf16.msra.mxu0 %v2323
        %2346 = vmatprep.subr.bf16.mxu0 0
        %2347 = vmatpush1.bf16.msra.mxu0 0
        %2348 = vmatprep.subr.bf16.mxu0 0
        %2349 = vmatpush1.bf16.msra.mxu0 0
        %2350 = vmatprep.subr.bf16.mxu0 0
        %2351 = vmatpush1.bf16.msra.mxu0 0
        %2352 = vmatprep.subr.bf16.mxu0 0
        %2353 = vmatpush1.bf16.msra.mxu0 0
        %2354 = vmatprep.subr.bf16.mxu0 0
        %2355 = vmatpush1.bf16.msra.mxu0 0
        %2356 = vmatprep.subr.bf16.mxu0 0
        %2357 = vmatpush1.bf16.msra.mxu0 0
        %2358 = vmatprep.subr.bf16.mxu0 0
        %2359 = vmatpush1.bf16.msra.mxu0 0
        %2360 = vmatprep.subr.bf16.mxu0 0
        %2361 = vmatpush1.bf16.msra.mxu0 0
        %2362 = vmatprep.subr.bf16.mxu0 0
        %2363 = vmatpush1.bf16.msra.mxu0 0
        %2364 = vmatprep.subr.bf16.mxu0 0
        %2365 = vmatpush1.bf16.msra.mxu0 0
        %2366 = vmatprep.mubr.bf16.mxu0 0
        %2367 = vmatmul.mubr.bf16.gmra.mrb[0].mxu0 %v2330
        %v2368 = vpop.f32.mrb[0].mxu0
        %v2369 = vadd.f32 0.0, %v2368
        %v2370 = vpop.f32.mrb[0].mxu0
        %v2371 = vpop.f32.mrb[0].mxu0
        %v2372 = vadd.f32 0.0, %v2371
        %v2373 = vpop.f32.mrb[0].mxu0
        %2374 = vmatprep.mubr.bf16.mxu0 0
        %2375 = vmatmul.mubr.bf16.gmra.mrb[0].mxu0 %v2332
        %v2376 = vpop.f32.mrb[0].mxu0
        %v2377 = vadd.f32 0.0, %v2376
        %v2378 = vpop.f32.mrb[0].mxu0
        %v2379 = vpop.f32.mrb[0].mxu0
        %v2380 = vadd.f32 0.0, %v2379
        %v2381 = vpop.f32.mrb[0].mxu0
        %2382 = vdwg.mxu0
        %v2395 = vunpack.c.l.b16 %v2233
        %v2396 = vunpack.c.l.b16 %v2234
        %v2397 = vunpack.c.l.b16 %v2235
        %v2398 = vunpack.c.l.b16 %v2236
        %v2399 = vunpack.c.l.b16 %v2237
        %v2400 = vunpack.c.l.b16 %v2238
        %v2401 = vunpack.c.l.b16 %v2239
        %v2402 = vunpack.c.l.b16 %v2240
        %v2403 = vunpack.c.l.b16 %v2241
        %v2404 = vunpack.c.l.b16 %v2242
        %v2405 = vunpack.c.l.b16 %v2243
        %v2406 = vunpack.c.l.b16 %v2244
        %v2407 = vpack.c.b16 %v2396, %v2395
        %v2408 = vpack.c.b16 %v2398, %v2397
        %v2409 = vpack.c.b16 %v2400, %v2399
        %v2410 = vpack.c.b16 %v2402, %v2401
        %v2411 = vpack.c.b16 %v2404, %v2403
        %v2412 = vpack.c.b16 %v2406, %v2405
        %2419 = vmatprep.subr.bf16.mxu0 0
        %2420 = vmatpush1.bf16.msra.mxu0 %v2407
        %2421 = vmatprep.subr.bf16.mxu0 0
        %2422 = vmatpush1.bf16.msra.mxu0 %v2408
        %2423 = vmatprep.subr.bf16.mxu0 0
        %2424 = vmatpush1.bf16.msra.mxu0 %v2409
        %2425 = vmatprep.subr.bf16.mxu0 0
        %2426 = vmatpush1.bf16.msra.mxu0 %v2410
        %2427 = vmatprep.subr.bf16.mxu0 0
        %2428 = vmatpush1.bf16.msra.mxu0 %v2411
        %2429 = vmatprep.subr.bf16.mxu0 0
        %2430 = vmatpush1.bf16.msra.mxu0 %v2412
        %2431 = vmatprep.subr.bf16.mxu0 0
        %2432 = vmatpush1.bf16.msra.mxu0 0
        %2433 = vmatprep.subr.bf16.mxu0 0
        %2434 = vmatpush1.bf16.msra.mxu0 0
        %2435 = vmatprep.subr.bf16.mxu0 0
        %2436 = vmatpush1.bf16.msra.mxu0 0
        %2437 = vmatprep.subr.bf16.mxu0 0
        %2438 = vmatpush1.bf16.msra.mxu0 0
        %2439 = vmatprep.subr.bf16.mxu0 0
        %2440 = vmatpush1.bf16.msra.mxu0 0
        %2441 = vmatprep.subr.bf16.mxu0 0
        %2442 = vmatpush1.bf16.msra.mxu0 0
        %2443 = vmatprep.subr.bf16.mxu0 0
        %2444 = vmatpush1.bf16.msra.mxu0 0
        %2445 = vmatprep.subr.bf16.mxu0 0
        %2446 = vmatpush1.bf16.msra.mxu0 0
        %2447 = vmatprep.subr.bf16.mxu0 0
        %2448 = vmatpush1.bf16.msra.mxu0 0
        %2449 = vmatprep.subr.bf16.mxu0 0
        %2450 = vmatpush1.bf16.msra.mxu0 0
        %2451 = vmatprep.mubr.bf16.mxu0 0
        %2452 = vmatmul.mubr.bf16.gmra.mrb[0].mxu0 %v1307
        %v2453 = vpop.f32.mrb[0].mxu0
        %v2454 = vadd.f32 %v2369, %v2453
        %v2455 = vpop.f32.mrb[0].mxu0
        %v2456 = vpop.f32.mrb[0].mxu0
        %v2457 = vadd.f32 %v2372, %v2456
        %v2458 = vpop.f32.mrb[0].mxu0
        %2459 = vmatprep.mubr.bf16.mxu0 0
        %2460 = vmatmul.mubr.bf16.gmra.mrb[0].mxu0 %v2330
        %v2461 = vpop.f32.mrb[0].mxu0
        %v2462 = vadd.f32 %v2377, %v2461
        %v2463 = vpop.f32.mrb[0].mxu0
        %v2464 = vpop.f32.mrb[0].mxu0
        %v2465 = vadd.f32 %v2380, %v2464
        %v2466 = vpop.f32.mrb[0].mxu0
        %2467 = vdwg.mxu0
        %s2468 = scalar_lea.vmem %s4, 96
        %v2469 = vld [vmem:[%s2468] sm:$0xf]
        %v2470 = vld [vmem:[%s2468 + $0x4] sm:$0xf]
        %v2471 = vld [vmem:[%s2468 + $0x8] sm:$0xf]
        %v2472 = vld [vmem:[%s2468 + $0xc] sm:$0xf]
        %v2473 = vld [vmem:[%s2468 + $0x10] sm:$0xf]
        %v2474 = vld [vmem:[%s2468 + $0x14] sm:$0xf]
        %v2475 = vld [vmem:[%s2468 + $0x18] sm:$0xf]
        %v2476 = vld [vmem:[%s2468 + $0x1c] sm:$0xf]
        %v2477 = vld [vmem:[%s2468 + $0x20] sm:$0xf]
        %v2478 = vld [vmem:[%s2468 + $0x24] sm:$0xf]
        %v2479 = vld [vmem:[%s2468 + $0x28] sm:$0xf]
        %v2480 = vld [vmem:[%s2468 + $0x2c] sm:$0xf]
        %v2493 = vunpack.c.l.b16 %v2469
        %v2494 = vunpack.c.l.b16 %v2470
        %v2495 = vunpack.c.l.b16 %v2471
        %v2496 = vunpack.c.l.b16 %v2472
        %v2497 = vunpack.c.l.b16 %v2473
        %v2498 = vunpack.c.l.b16 %v2474
        %v2499 = vunpack.c.l.b16 %v2475
        %v2500 = vunpack.c.l.b16 %v2476
        %v2501 = vunpack.c.l.b16 %v2477
        %v2502 = vunpack.c.l.b16 %v2478
        %v2503 = vunpack.c.l.b16 %v2479
        %v2504 = vunpack.c.l.b16 %v2480
        %v2505 = vpack.c.b16 %v2494, %v2493
        %v2506 = vpack.c.b16 %v2496, %v2495
        %v2507 = vpack.c.b16 %v2498, %v2497
        %v2508 = vpack.c.b16 %v2500, %v2499
        %v2509 = vpack.c.b16 %v2502, %v2501
        %v2510 = vpack.c.b16 %v2504, %v2503
        %2517 = vmatprep.subr.bf16.mxu0 0
        %2518 = vmatpush1.bf16.msra.mxu0 %v2505
        %2519 = vmatprep.subr.bf16.mxu0 0
        %2520 = vmatpush1.bf16.msra.mxu0 %v2506
        %2521 = vmatprep.subr.bf16.mxu0 0
        %2522 = vmatpush1.bf16.msra.mxu0 %v2507
        %2523 = vmatprep.subr.bf16.mxu0 0
        %2524 = vmatpush1.bf16.msra.mxu0 %v2508
        %2525 = vmatprep.subr.bf16.mxu0 0
        %2526 = vmatpush1.bf16.msra.mxu0 %v2509
        %2527 = vmatprep.subr.bf16.mxu0 0
        %2528 = vmatpush1.bf16.msra.mxu0 %v2510
        %2529 = vmatprep.subr.bf16.mxu0 0
        %2530 = vmatpush1.bf16.msra.mxu0 0
        %2531 = vmatprep.subr.bf16.mxu0 0
        %2532 = vmatpush1.bf16.msra.mxu0 0
        %2533 = vmatprep.subr.bf16.mxu0 0
        %2534 = vmatpush1.bf16.msra.mxu0 0
        %2535 = vmatprep.subr.bf16.mxu0 0
        %2536 = vmatpush1.bf16.msra.mxu0 0
        %2537 = vmatprep.subr.bf16.mxu0 0
        %2538 = vmatpush1.bf16.msra.mxu0 0
        %2539 = vmatprep.subr.bf16.mxu0 0
        %2540 = vmatpush1.bf16.msra.mxu0 0
        %2541 = vmatprep.subr.bf16.mxu0 0
        %2542 = vmatpush1.bf16.msra.mxu0 0
        %2543 = vmatprep.subr.bf16.mxu0 0
        %2544 = vmatpush1.bf16.msra.mxu0 0
        %2545 = vmatprep.subr.bf16.mxu0 0
        %2546 = vmatpush1.bf16.msra.mxu0 0
        %2547 = vmatprep.subr.bf16.mxu0 0
        %2548 = vmatpush1.bf16.msra.mxu0 0
        %2549 = vmatprep.mubr.bf16.mxu0 0
        %2550 = vmatmul.mubr.bf16.gmra.mrb[0].mxu0 %v2332
        %v2551 = vpop.f32.mrb[0].mxu0
        %v2552 = vadd.f32 0.0, %v2551
        %v2553 = vpop.f32.mrb[0].mxu0
        %v2554 = vpop.f32.mrb[0].mxu0
        %v2555 = vadd.f32 0.0, %v2554
        %v2556 = vpop.f32.mrb[0].mxu0
        %2557 = vmatprep.mubr.bf16.mxu0 0
        %2558 = vmatmul.mubr.bf16.gmra.mrb[0].mxu0 %v1307
        %v2559 = vpop.f32.mrb[0].mxu0
        %v2560 = vadd.f32 0.0, %v2559
        %v2561 = vpop.f32.mrb[0].mxu0
        %v2562 = vpop.f32.mrb[0].mxu0
        %v2563 = vadd.f32 0.0, %v2562
        %v2564 = vpop.f32.mrb[0].mxu0
        %2565 = vdwg.mxu0
        %v2566 = vadd.f32 %v2454, %v2552
        %v2567 = vadd.f32 %v2457, %v2555
        %v2568 = vadd.f32 %v2462, %v2560
        %v2569 = vadd.f32 %v2465, %v2563
        %v2570 = vld [vmem:[%s5 + $0x3] sm:$0x1]
        %v2571 = vlaneseq
        %v2572 = vshrl.u32 %v2571, 7
        %v2573 = vsub.s32 0, %v2572
        %v2574 = vrot.slane %v2570, %v2573
        %v2575 = vadd.f32 %v2566, %v2574
        %v2576 = vadd.f32 %v2567, %v2574
        %v2577 = vadd.f32 %v2568, %v2574
        %v2578 = vadd.f32 %v2569, %v2574
        %s2579 = sld [smem:[#allocation2 + $0x3]]
        %vm2580 = vcmp.ge.f32.partialorder %v2575, 0.0
        %vm2581 = vcmp.ge.f32.partialorder %v2576, 0.0
        %vm2582 = vcmp.ge.f32.partialorder %v2577, 0.0
        %vm2583 = vcmp.ge.f32.partialorder %v2578, 0.0
        %v2584 = vstv %s2579
        %v2585 = vmul.f32 %v2584, %v2575
        %v2586 = vmul.f32 %v2584, %v2576
        %v2587 = vmul.f32 %v2584, %v2577
        %v2588 = vmul.f32 %v2584, %v2578
        %v2589 = vsel %vm2580, %v2575, %v2585
        %v2590 = vsel %vm2581, %v2576, %v2586
        %v2591 = vsel %vm2582, %v2577, %v2587
        %v2592 = vsel %vm2583, %v2578, %v2588
        %v2593 = vmax.f32 %v2589, %v2591
        %v2594 = vmax.f32 %v2590, %v2592
        %2595 = vst.msk [vmem:[%s285] sm:$0xff] %vm1026, %v2593
        %2596 = vst.msk [vmem:[%s285 + $0x8] sm:$0xff] %vm1026, %v2594
        %s2597 = sand.u32 %s182, 1
        %s2598 = scalar_lea.sflag [#allocation3], %s2597
        %s2599 = sand.u32 %s182, 1
        %s2600 = smul.addr %s2599, 16
        %s2601 = scalar_lea.vmem [#allocation5], %s2600
        // Predicated region
        $region53: #{cnn_embedder.1} parent=47 // pred_check
          %p2602 = pneg %p192
        $region54: #{cnn_embedder.1} parent=47 // pred_check_branch
          %2604 = sbr.rel (%p2602) target = $region56
        $region55: #{cnn_embedder.1} parent=47 // pred_region
          %s2606 = ssub.s32 256, 256
          %2607 = vsyncadd %s2598, %s2606
          %s2608 = smul.addr %s22, 2
          %s2609 = smul.addr %s2608, 128
          %s2610 = scalar_lea.hbm %s7, %s2609
          %s2611 = sshll.u32 %s2601, 4
          %s2612 = int_to_ptr.vmem [resolvable:$true] %s2611
          %2617 = dma.vmem_to_hbm [thread:$0]  %s2612, 256, %s2610, %s2598, 128, 128, 8
        $region56: #{cnn_embedder.1} parent=47 // pred_fallthru
          _
      $region48: #{cnn_embedder.1} parent=5 // pred_fallthru
        _
      %p2618 = scmp.le.s32.totalorder 2, %s17
      // Predicated region
      $region57: #{cnn_embedder.1} parent=5 // pred_check
        %p2619 = pneg %p2618
      $region58: #{cnn_embedder.1} parent=5 // pred_check_branch
        %2621 = sbr.rel (%p2619) target = $region60
      $region59: #{cnn_embedder.1} parent=5 // pred_region
        %s2622 = ssub.s32 %s17, 2
        // Predicated region
        $region61: #{cnn_embedder.1} parent=59 // pred_check
          %p2623 = pneg %p198
        $region62: #{cnn_embedder.1} parent=59 // pred_check_branch
          %2625 = sbr.rel (%p2623) target = $region64
        $region63: #{cnn_embedder.1} parent=59 // pred_region
          %s2626 = sand.u32 %s183, 1
          %s2627 = scalar_lea.sflag [#allocation3], %s2626
          %s2628 = sand.u32 %s183, 1
          %s2629 = smul.addr %s2628, 16
          %s2630 = scalar_lea.vmem [#allocation5], %s2629
          %2631 = dma.done %s2627, 256
        $region64: #{cnn_embedder.1} parent=59 // pred_fallthru
          _
      $region60: #{cnn_embedder.1} parent=5 // pred_fallthru
        _
    $region6: #{cnn_embedder.1} parent=1 // loop_footer
      %s21 = sadd.s32 1, %s17
    $region7: #{cnn_embedder.1} parent=1 // loop_footer_branch
      %16 = sbr.rel target = $region3
    $region8: #{cnn_embedder.1} parent=1 // loop_exit
      _
    %2632 = vsyncpa [#allocation3], 1
    %s2633 = scalar_lea.sflag [#allocation3], 1
    %2634 = vsyncpa %s2633, 1
    %2635 = vsyncpa [#allocation4], 1
    %s2636 = scalar_lea.sflag [#allocation4], 1
    %2637 = vsyncpa %s2636, 1

</llo_original>
